<compile_context>
chip_gen: v7x
topology: tpu7x:2x2x1
jax: 0.10.0
libtpu: 0.0.40
codegen_flags: <defaults>
</compile_context>

<pallas_src>
import functools

import jax
import jax.numpy as jnp
from jax import lax
from jax.experimental import pallas as pl
from jax.experimental.pallas import tpu as pltpu


def _mha_kernel(x_ref, wqkv_ref, wpt_ref, bp_ref, o_ref, *, num_heads: int, head_size: int):
    """One grid step == one batch element. Everything stays in VMEM."""
    H, hs = num_heads, head_size
    T = x_ref.shape[1]
    Hh = H * hs
    mm_dtype = x_ref.dtype  # matmul operand dtype (f32 or bf16); accumulation is always f32

    x = x_ref[0]                                                   # (T, C)

    # --- fused Q/K/V projection for all heads: one lane-dense matmul ------------
    # scale (C**-0.5) is pre-folded into the Q columns of wqkv on the host.
    qkv = jnp.dot(x, wqkv_ref[...], preferred_element_type=jnp.float32)   # (T, 3*H*hs) f32

    q = qkv[:, 0 * Hh:1 * Hh].reshape(T, H, hs).astype(mm_dtype)   # (T, H, hs)
    k = qkv[:, 1 * Hh:2 * Hh].reshape(T, H, hs).astype(mm_dtype)   # (T, H, hs)
    v = qkv[:, 2 * Hh:3 * Hh].reshape(T, H, hs).astype(mm_dtype)   # (T, H, hs)

    # --- batched-over-heads attention scores ------------------------------------
    s = jnp.einsum('qhd,khd->hqk', q, k,
                   preferred_element_type=jnp.float32)             # (H, T, T) f32

    # causal mask generated in-kernel (no (T,T) HBM->VMEM DMA), hoisted, finite fill
    row = lax.broadcasted_iota(jnp.int32, (T, T), 0)
    col = lax.broadcasted_iota(jnp.int32, (T, T), 1)
    causal = (col <= row)[None, :, :]                              # (1, T, T) bool
    s = jnp.where(causal, s, jnp.float32(-1e30))

    # --- numerically stable softmax over all heads at once (f32) ----------------
    m = jnp.max(s, axis=-1, keepdims=True)
    e = jnp.exp(s - m)
    denom = jnp.sum(e, axis=-1, keepdims=True)
    p = e * pl.reciprocal(denom, approx=True)                      # EUP reciprocal

    # --- attention output, all heads batched ------------------------------------
    av = jnp.einsum('hqk,khd->qhd', p.astype(mm_dtype), v,
                    preferred_element_type=jnp.float32)            # (T, H, hs) f32

    # --- output projection; the reshape IS the head concat (no jnp.concatenate) --
    o_flat = av.reshape(T, Hh).astype(mm_dtype)                    # (T, C)
    y = jnp.dot(o_flat, wpt_ref[...], preferred_element_type=jnp.float32)  # (T, C)
    y = y + bp_ref[0]
    o_ref[0] = y.astype(o_ref.dtype)


def multi_head_attention(x, wq, wk, wv, wp, bp, *, num_heads, head_size,
                         matmul_dtype=jnp.float32):
    """x: (B, T, C); wq/wk/wv: (H, C, hs); wp: (C, C) torch layout (out, in); bp: (C,).

    matmul_dtype: dtype of MXU operands (use jnp.bfloat16 on v6e/v7x for the fast
    MXU path). Accumulation and softmax stay in float32.
    """
    B, T, C = x.shape
    H, hs = num_heads, head_size
    assert H * hs == C, "concat of heads must equal n_embed"

    # NOTE: PyTorch Head scales by C**-0.5 (n_embed), not head_size**-0.5.
    # Fold the scale into the Q projection columns (one-time host op).
    scale = jnp.float32(C) ** -0.5
    wq_f = jnp.transpose(wq, (1, 0, 2)).reshape(C, H * hs) * scale   # (C, H*hs)
    wk_f = jnp.transpose(wk, (1, 0, 2)).reshape(C, H * hs)
    wv_f = jnp.transpose(wv, (1, 0, 2)).reshape(C, H * hs)
    w_qkv = jnp.concatenate([wq_f, wk_f, wv_f], axis=-1).astype(matmul_dtype)  # (C, 3*H*hs)

    wp_t = wp.T.astype(matmul_dtype)        # (in, out) so the kernel does a plain o @ W
    bp_2d = bp.reshape(1, C).astype(jnp.float32)
    x_in = x.astype(matmul_dtype)

    kernel = functools.partial(_mha_kernel, num_heads=H, head_size=hs)

    return pl.pallas_call(
        kernel,
        out_shape=jax.ShapeDtypeStruct((B, T, C), x.dtype),
        grid_spec=pltpu.PrefetchScalarGridSpec(
            num_scalar_prefetch=0,
            grid=(B,),
            in_specs=[
                pl.BlockSpec((1, T, C), lambda b: (b, 0, 0)),          # x block per batch
                pl.BlockSpec((C, 3 * H * hs), lambda b: (0, 0)),       # fused QKV weights (resident)
                pl.BlockSpec((C, C), lambda b: (0, 0)),                # proj weight (transposed)
                pl.BlockSpec((1, C), lambda b: (0, 0)),                # proj bias
            ],
            out_specs=pl.BlockSpec((1, T, C), lambda b: (b, 0, 0)),
        ),
        compiler_params=pltpu.CompilerParams(dimension_semantics=("parallel",)),
    )(x_in, w_qkv, wp_t, bp_2d)


def _reference(x, wq, wk, wv, wp, bp, tril):
    """Plain-JAX replica of the PyTorch forward (eval mode)."""
    B, T, C = x.shape
    outs = []
    for h in range(wq.shape[0]):
        q = x @ wq[h]
        k = x @ wk[h]
        v = x @ wv[h]
        w = (q @ jnp.swapaxes(k, -2, -1)) * (C ** -0.5)
        w = jnp.where(tril[:T, :T] == 0.0, -jnp.inf, w)
        w = jax.nn.softmax(w, axis=-1)
        outs.append(w @ v)
    o = jnp.concatenate(outs, axis=-1)
    return o @ wp.T + bp


if __name__ == "__main__":
    # Module hyper-params (small, consistent with the forward pass)
    n_embed = 32
    num_heads = 4
    head_size = n_embed // num_heads   # 8, so concat of heads == n_embed
    BLOCK_SIZE = 8                     # sequence length T
    B, T = 2, BLOCK_SIZE

    key = jax.random.PRNGKey(0)
    kx, kq, kk, kv, kp, kb = jax.random.split(key, 6)

    # Deterministic parameter init (synthetic; torch Linear weight layout is (out, in))
    x = jax.random.normal(kx, (B, T, n_embed), dtype=jnp.float32)
    wq = jax.random.normal(kq, (num_heads, n_embed, head_size), dtype=jnp.float32) * 0.1
    wk = jax.random.normal(kk, (num_heads, n_embed, head_size), dtype=jnp.float32) * 0.1
    wv = jax.random.normal(kv, (num_heads, n_embed, head_size), dtype=jnp.float32) * 0.1
    wp = jax.random.normal(kp, (n_embed, n_embed), dtype=jnp.float32) * 0.1   # (out, in)
    bp = jax.random.normal(kb, (n_embed,), dtype=jnp.float32) * 0.1
    tril = jnp.tril(jnp.ones((BLOCK_SIZE, BLOCK_SIZE), dtype=jnp.float32))

    ref = _reference(x, wq, wk, wv, wp, bp, tril)

    # f32 MXU-operand path
    out_f32 = jax.block_until_ready(
        multi_head_attention(x, wq, wk, wv, wp, bp,
                             num_heads=num_heads, head_size=head_size,
                             matmul_dtype=jnp.float32))
    assert out_f32.shape == (B, T, n_embed)
    assert jnp.allclose(out_f32, ref, atol=1e-2, rtol=1e-2), "f32 path mismatch vs reference"

    # bf16 MXU-operand path (v6e/v7x fast path; f32 accumulation + f32 softmax)
    out_bf16 = jax.block_until_ready(
        multi_head_attention(x, wq, wk, wv, wp, bp,
                             num_heads=num_heads, head_size=head_size,
                             matmul_dtype=jnp.bfloat16))
    assert out_bf16.shape == (B, T, n_embed)
    assert jnp.allclose(out_bf16, ref, atol=5e-2, rtol=5e-2), "bf16 path mismatch vs reference"

    print("KERNEL_OK")
</pallas_src>

<mosaic_0001>
module attributes {stable_mosaic.version = 11 : i64} {
  func.func @_mha_kernel(%arg0: i32, %arg1: memref<1x8x32xf32, #tpu.memory_space<vmem>>, %arg2: memref<32x96xf32, #tpu.memory_space<vmem>>, %arg3: memref<32x32xf32, #tpu.memory_space<vmem>>, %arg4: memref<1x32xf32, #tpu.memory_space<vmem>>, %arg5: memref<1x8x32xf32, #tpu.memory_space<vmem>>) attributes {dimension_semantics = [#tpu.dimension_semantics<parallel>], iteration_bounds = array<i64: 2>, scalar_prefetch = 0 : i64, scratch_operands = 0 : i64, tpu.core_type = #tpu.core_type<tc>, window_params = [{transform_indices = @transform_0, window_bounds = array<i64: 1, 8, 32>}, {pipeline_mode = #tpu.pipeline_mode<synchronous>, transform_indices = @transform_1, window_bounds = array<i64: 32, 96>}, {pipeline_mode = #tpu.pipeline_mode<synchronous>, transform_indices = @transform_2, window_bounds = array<i64: 32, 32>}, {pipeline_mode = #tpu.pipeline_mode<synchronous>, transform_indices = @transform_3, window_bounds = array<i64: 1, 32>}, {transform_indices = @transform_4, window_bounds = array<i64: 1, 8, 32>}]} {
    %c0 = arith.constant 0 : index
    %c0_0 = arith.constant 0 : index
    %c0_1 = arith.constant 0 : index
    %0 = vector.load %arg1[%c0, %c0_0, %c0_1] : memref<1x8x32xf32, #tpu.memory_space<vmem>>, vector<1x8x32xf32>
    %1 = vector.shape_cast %0 : vector<1x8x32xf32> to vector<8x32xf32>
    %c0_2 = arith.constant 0 : index
    %c0_3 = arith.constant 0 : index
    %2 = vector.load %arg2[%c0_2, %c0_3] : memref<32x96xf32, #tpu.memory_space<vmem>>, vector<32x96xf32>
    %cst = arith.constant dense<0.000000e+00> : vector<8x96xf32>
    %3 = tpu.matmul %1, %2, %cst {dimension_numbers = #tpu.dot_dimension_numbers<[1], [0], [0], [1], [0, 0, 1, 1], [], []>} : vector<8x32xf32>, vector<32x96xf32>, vector<8x96xf32> -> vector<8x96xf32>
    %4 = vector.extract_strided_slice %3 {offsets = [0, 0], sizes = [8, 32], strides = [1, 1]} : vector<8x96xf32> to vector<8x32xf32>
    %5 = vector.shape_cast %4 : vector<8x32xf32> to vector<8x4x8xf32>
    %6 = vector.extract_strided_slice %3 {offsets = [0, 32], sizes = [8, 32], strides = [1, 1]} : vector<8x96xf32> to vector<8x32xf32>
    %7 = vector.shape_cast %6 : vector<8x32xf32> to vector<8x4x8xf32>
    %8 = vector.extract_strided_slice %3 {offsets = [0, 64], sizes = [8, 32], strides = [1, 1]} : vector<8x96xf32> to vector<8x32xf32>
    %9 = vector.shape_cast %8 : vector<8x32xf32> to vector<8x4x8xf32>
    "tpu.trace_start"() <{level = 10 : i32, message = "qhd,khd->hqk"}> : () -> ()
    %cst_4 = arith.constant dense<0.000000e+00> : vector<4x8x8xf32>
    %10 = tpu.matmul %5, %7, %cst_4 {dimension_numbers = #tpu.dot_dimension_numbers<[2], [2], [0], [0], [0, 1, 0, 0, 1, 0], [1], [1]>} : vector<8x4x8xf32>, vector<8x4x8xf32>, vector<4x8x8xf32> -> vector<4x8x8xf32>
    "tpu.trace_stop"() : () -> ()
    %11 = tpu.iota {dimensions = array<i32: 0>} : vector<8x8xi32>
    %12 = tpu.iota {dimensions = array<i32: 1>} : vector<8x8xi32>
    %13 = arith.cmpi sle, %12, %11 : vector<8x8xi32>
    %14 = vector.shape_cast %13 : vector<8x8xi1> to vector<1x8x8xi1>
    %cst_5 = arith.constant -1.000000e+30 : f32
    %15 = vector.shape_cast %14 : vector<1x8x8xi1> to vector<1x8x8xi1>
    %16 = vector.broadcast %15 : vector<1x8x8xi1> to vector<4x8x8xi1>
    %17 = vector.broadcast %cst_5 : f32 to vector<4x8x8xf32>
    %18 = arith.select %16, %10, %17 : vector<4x8x8xi1>, vector<4x8x8xf32>
    %cst_6 = arith.constant dense<0xFF800000> : vector<4x8xf32>
    %19 = vector.multi_reduction <maximumf>, %18, %cst_6 [2] : vector<4x8x8xf32> to vector<4x8xf32>
    %20 = vector.shape_cast %19 : vector<4x8xf32> to vector<4x8x1xf32>
    %21 = vector.broadcast %20 : vector<4x8x1xf32> to vector<4x8x8xf32>
    %22 = arith.subf %18, %21 : vector<4x8x8xf32>
    %23 = math.exp %22 : vector<4x8x8xf32>
    %cst_7 = arith.constant dense<0.000000e+00> : vector<4x8xf32>
    %24 = vector.multi_reduction <add>, %23, %cst_7 [2] : vector<4x8x8xf32> to vector<4x8xf32>
    %25 = vector.shape_cast %24 : vector<4x8xf32> to vector<4x8x1xf32>
    %26 = tpu.reciprocal %25 {approx = true} : vector<4x8x1xf32> -> vector<4x8x1xf32>
    %27 = vector.broadcast %26 : vector<4x8x1xf32> to vector<4x8x8xf32>
    %28 = arith.mulf %23, %27 : vector<4x8x8xf32>
    "tpu.trace_start"() <{level = 10 : i32, message = "hqk,khd->qhd"}> : () -> ()
    %cst_8 = arith.constant dense<0.000000e+00> : vector<4x8x8xf32>
    %29 = tpu.matmul %9, %28, %cst_8 {dimension_numbers = #tpu.dot_dimension_numbers<[0], [2], [2], [1], [0, 1, 0, 2, 1, 1], [1], [0]>} : vector<8x4x8xf32>, vector<4x8x8xf32>, vector<4x8x8xf32> -> vector<4x8x8xf32>
    %30 = tpu.transpose %29, [2, 0, 1] : vector<4x8x8xf32> -> vector<8x4x8xf32>
    "tpu.trace_stop"() : () -> ()
    %31 = vector.shape_cast %30 : vector<8x4x8xf32> to vector<8x32xf32>
    %c0_9 = arith.constant 0 : index
    %c0_10 = arith.constant 0 : index
    %32 = vector.load %arg3[%c0_9, %c0_10] : memref<32x32xf32, #tpu.memory_space<vmem>>, vector<32x32xf32>
    %cst_11 = arith.constant dense<0.000000e+00> : vector<8x32xf32>
    %33 = tpu.matmul %31, %32, %cst_11 {dimension_numbers = #tpu.dot_dimension_numbers<[1], [0], [0], [1], [0, 0, 1, 1], [], []>} : vector<8x32xf32>, vector<32x32xf32>, vector<8x32xf32> -> vector<8x32xf32>
    %c0_12 = arith.constant 0 : index
    %c0_13 = arith.constant 0 : index
    %34 = vector.load %arg4[%c0_12, %c0_13] : memref<1x32xf32, #tpu.memory_space<vmem>>, vector<1x32xf32>
    %35 = vector.shape_cast %34 : vector<1x32xf32> to vector<32xf32>
    %36 = vector.shape_cast %35 : vector<32xf32> to vector<1x32xf32>
    %37 = vector.broadcast %36 : vector<1x32xf32> to vector<8x32xf32>
    %38 = arith.addf %33, %37 : vector<8x32xf32>
    %c0_14 = arith.constant 0 : index
    %c0_15 = arith.constant 0 : index
    %c0_16 = arith.constant 0 : index
    %39 = vector.load %arg5[%c0_14, %c0_15, %c0_16] : memref<1x8x32xf32, #tpu.memory_space<vmem>>, vector<1x8x32xf32>
    %40 = vector.shape_cast %39 : vector<1x8x32xf32> to vector<8x32xf32>
    %41 = vector.shape_cast %38 : vector<8x32xf32> to vector<1x8x32xf32>
    tpu.vector_store %arg5[%c0_14, %c0_15, %c0_16], %41 {strides = array<i32>} : memref<1x8x32xf32, #tpu.memory_space<vmem>>, vector<1x8x32xf32>,
    return
  }
  func.func @transform_0(%arg0: i32) -> (i32, i32, i32) {
    %c0_i32 = arith.constant 0 : i32
    %c0_i32_0 = arith.constant 0 : i32
    %c0_i32_1 = arith.constant 0 : i32
    return %arg0, %c0_i32, %c0_i32_0 : i32, i32, i32
  }
  func.func @transform_1(%arg0: i32) -> (i32, i32) {
    %c0_i32 = arith.constant 0 : i32
    %c0_i32_0 = arith.constant 0 : i32
    %c0_i32_1 = arith.constant 0 : i32
    return %c0_i32, %c0_i32_0 : i32, i32
  }
  func.func @transform_2(%arg0: i32) -> (i32, i32) {
    %c0_i32 = arith.constant 0 : i32
    %c0_i32_0 = arith.constant 0 : i32
    %c0_i32_1 = arith.constant 0 : i32
    return %c0_i32, %c0_i32_0 : i32, i32
  }
  func.func @transform_3(%arg0: i32) -> (i32, i32) {
    %c0_i32 = arith.constant 0 : i32
    %c0_i32_0 = arith.constant 0 : i32
    %c0_i32_1 = arith.constant 0 : i32
    return %c0_i32, %c0_i32_0 : i32, i32
  }
  func.func @transform_4(%arg0: i32) -> (i32, i32, i32) {
    %c0_i32 = arith.constant 0 : i32
    %c0_i32_0 = arith.constant 0 : i32
    %c0_i32_1 = arith.constant 0 : i32
    return %arg0, %c0_i32, %c0_i32_0 : i32, i32, i32
  }
}

</mosaic_0001>

<llo_original>
// kernel: tpu_custom_call.1
$region0: #{tpu_custom_call.1}
  #allocation0 [shape = 'u32[]', space=smem, size = 0x4, offset = 0x4, fixed_abs, tag = 'smem constant byte address 0x4 - core index']
  #allocation1 [shape = 'u32[144,128]{1,0:T(1,128)}', space=vmem, size = 0x12000, scoped, tag = 'internal scratch']
  %s0 = inlined_call_operand.hbm [shape: f32[2,8,32], index: 0, kind: input, shape index: {}]
  %s1 = inlined_call_operand.hbm [shape: f32[32,96], index: 1, kind: input, shape index: {}]
  %s2 = inlined_call_operand.hbm [shape: f32[32,32], index: 2, kind: input, shape index: {}]
  %s3 = inlined_call_operand.vmem [shape: f32[1,32], index: 3, kind: input, shape index: {}]
  %s4 = inlined_call_operand.hbm [shape: f32[2,8,32], index: 4, kind: output, shape index: {}]
  %s5 = sld [smem:[#allocation0]]
  $region61: #{tpu_custom_call.1} parent=0
    _
  %s7 = ssub.s32 1, %s5
  %s8 = scalar_select 0, %s7, %s5
  $region1: #{tpu_custom_call.1} parent=0
    #allocation2 [shape = 'u8[8192]{0}', space=vmem, size = 0x2000, scoped, tag = 'input window, operand 0']
    #allocation3 [shape = 's32[2]{0}', space=sflag, size = 0x8, scoped, tag = 'scoped memory for tpu_custom_call.1']
    #allocation4 [shape = 's32[2]{0}', space=sflag, size = 0x8, scoped, tag = 'scoped memory for tpu_custom_call.1']
    #allocation5 [shape = 'u8[16384]{0}', space=vmem, size = 0x4000, scoped, tag = 'input window, operand 1, single buffered']
    #allocation6 [shape = 's32[1]{0}', space=sflag, size = 0x4, scoped, tag = 'scoped memory for tpu_custom_call.1']
    #allocation7 [shape = 'u8[16384]{0}', space=vmem, size = 0x4000, scoped, tag = 'input window, operand 2, single buffered']
    #allocation8 [shape = 'u8[8192]{0}', space=vmem, size = 0x2000, scoped, tag = 'output window, operand 0']
    %9 = vsyncpa [#allocation3], 0
    %s10 = scalar_lea.sflag [#allocation3], 1
    %11 = vsyncpa %s10, 0
    %12 = vsyncpa [#allocation6], 0
    %13 = vsyncpa [#allocation4], 0
    %s14 = scalar_lea.sflag [#allocation4], 1
    %15 = vsyncpa %s14, 0
    loop: start=0, step=1, limit=4
    $region2: #{tpu_custom_call.1} parent=1 // loop_pre_header
      _
    $region3: #{tpu_custom_call.1} parent=1 // loop_header
      %s17 = sphi 0, %s21
      %p18 = scmp.ge.s32.totalorder %s17, 4
      %s27 = sphi 0, %s29
      %s30 = sphi 0, %s27
      %s31 = sphi 0, %s30
      %s47 = sphi 0, %s31
      %s51 = sphi 0, %s51
      %s53 = sphi 0, %s51
      %s54 = sphi 0, %s53
      %s68 = sphi 0, %s54
      %s72 = sphi 0, %s72
      %s74 = sphi 0, %s72
      %s75 = sphi 0, %s74
      %s89 = sphi 0, %s75
      %s93 = sphi 0, %s93
      %s95 = sphi 0, %s93
      %s96 = sphi 0, %s95
      %s110 = sphi 0, %s96
      %s116 = sphi 0, %s118
      %s119 = sphi 0, %s116
      %s120 = sphi 0, %s119
      %s136 = sphi 0, %s120
    $region4: #{tpu_custom_call.1} parent=1 // loop_header_branch
      %20 = sbr.rel (%p18) target = $region8
    $region5: #{tpu_custom_call.1} parent=1 // loop_body
      %s22 = ssub.s32 %s17, 1
      %s23 = ssub.s32 %s17, 2
      %s24 = sadd.s32 %s17, 1
      %s25 = ssub.s32 %s17, %s24
      %p26 = scmp.eq.s32.totalorder %s25, 0
      %s28 = sadd.s32 %s27, 1
      %s29 = scalar_select %p26, %s27, %s28
      %p32 = pneg %p26
      %p33 = scmp.eq.s32.totalorder %s17, 1
      %p34 = por %p32, %p33
      %p35 = scmp.ne.s32.totalorder %s27, %s30
      %p36 = scmp.eq.s32.totalorder %s17, 0
      %p37 = por %p35, %p36
      %p38 = scmp.ne.s32.totalorder %s27, %s30
      %p39 = scmp.eq.s32.totalorder %s22, 1
      %p40 = por %p38, %p39
      %p41 = scmp.ne.s32.totalorder %s30, %s31
      %p42 = scmp.eq.s32.totalorder %s22, 0
      %p43 = por %p41, %p42
      %p44 = scmp.ne.s32.totalorder %s30, %s31
      %p45 = scmp.eq.s32.totalorder %s23, 1
      %p46 = por %p44, %p45
      %p48 = scmp.ne.s32.totalorder %s31, %s47
      %p49 = scmp.eq.s32.totalorder %s23, 0
      %p50 = por %p48, %p49
      %s52 = sadd.s32 %s51, 1
      %p55 = scmp.eq.s32.totalorder %s17, 1
      %p56 = scmp.ne.s32.totalorder %s51, %s53
      %p57 = scmp.eq.s32.totalorder %s17, 0
      %p58 = por %p56, %p57
      %p59 = scmp.ne.s32.totalorder %s51, %s53
      %p60 = scmp.eq.s32.totalorder %s22, 1
      %p61 = por %p59, %p60
      %p62 = scmp.ne.s32.totalorder %s53, %s54
      %p63 = scmp.eq.s32.totalorder %s22, 0
      %p64 = por %p62, %p63
      %p65 = scmp.ne.s32.totalorder %s53, %s54
      %p66 = scmp.eq.s32.totalorder %s23, 1
      %p67 = por %p65, %p66
      %p69 = scmp.ne.s32.totalorder %s54, %s68
      %p70 = scmp.eq.s32.totalorder %s23, 0
      %p71 = por %p69, %p70
      %s73 = sadd.s32 %s72, 1
      %p76 = scmp.eq.s32.totalorder %s17, 1
      %p77 = scmp.ne.s32.totalorder %s72, %s74
      %p78 = scmp.eq.s32.totalorder %s17, 0
      %p79 = por %p77, %p78
      %p80 = scmp.ne.s32.totalorder %s72, %s74
      %p81 = scmp.eq.s32.totalorder %s22, 1
      %p82 = por %p80, %p81
      %p83 = scmp.ne.s32.totalorder %s74, %s75
      %p84 = scmp.eq.s32.totalorder %s22, 0
      %p85 = por %p83, %p84
      %p86 = scmp.ne.s32.totalorder %s74, %s75
      %p87 = scmp.eq.s32.totalorder %s23, 1
      %p88 = por %p86, %p87
      %p90 = scmp.ne.s32.totalorder %s75, %s89
      %p91 = scmp.eq.s32.totalorder %s23, 0
      %p92 = por %p90, %p91
      %s94 = sadd.s32 %s93, 1
      %p97 = scmp.eq.s32.totalorder %s17, 1
      %p98 = scmp.ne.s32.totalorder %s93, %s95
      %p99 = scmp.eq.s32.totalorder %s17, 0
      %p100 = por %p98, %p99
      %p101 = scmp.ne.s32.totalorder %s93, %s95
      %p102 = scmp.eq.s32.totalorder %s22, 1
      %p103 = por %p101, %p102
      %p104 = scmp.ne.s32.totalorder %s95, %s96
      %p105 = scmp.eq.s32.totalorder %s22, 0
      %p106 = por %p104, %p105
      %p107 = scmp.ne.s32.totalorder %s95, %s96
      %p108 = scmp.eq.s32.totalorder %s23, 1
      %p109 = por %p107, %p108
      %p111 = scmp.ne.s32.totalorder %s96, %s110
      %p112 = scmp.eq.s32.totalorder %s23, 0
      %p113 = por %p111, %p112
      %s114 = ssub.s32 %s17, %s24
      %p115 = scmp.eq.s32.totalorder %s114, 0
      %s117 = sadd.s32 %s116, 1
      %s118 = scalar_select %p115, %s116, %s117
      %p121 = pneg %p115
      %p122 = scmp.eq.s32.totalorder %s17, 1
      %p123 = por %p121, %p122
      %p124 = scmp.ne.s32.totalorder %s116, %s119
      %p125 = scmp.eq.s32.totalorder %s17, 0
      %p126 = por %p124, %p125
      %p127 = scmp.ne.s32.totalorder %s116, %s119
      %p128 = scmp.eq.s32.totalorder %s22, 1
      %p129 = por %p127, %p128
      %p130 = scmp.ne.s32.totalorder %s119, %s120
      %p131 = scmp.eq.s32.totalorder %s22, 0
      %p132 = por %p130, %p131
      %p133 = scmp.ne.s32.totalorder %s119, %s120
      %p134 = scmp.eq.s32.totalorder %s23, 1
      %p135 = por %p133, %p134
      %p137 = scmp.ne.s32.totalorder %s120, %s136
      %p138 = scmp.eq.s32.totalorder %s23, 0
      %p139 = por %p137, %p138
      %p140 = scmp.le.s32.totalorder 1, %s17
      %p141 = scmp.lt.s32.totalorder %s17, 3
      %p142 = pnand %p140, %p141
      %p143 = pneg %p142
      // Predicated region
      $region9: #{tpu_custom_call.1} parent=5 // pred_check
        _
      $region10: #{tpu_custom_call.1} parent=5 // pred_check_branch
        %145 = sbr.rel (%p142) target = $region12
      $region11: #{tpu_custom_call.1} parent=5 // pred_region
        %s146 = ssub.s32 %s17, 1
        // Predicated region
        $region13: #{tpu_custom_call.1} parent=11 // pred_check
          %p147 = pneg %p64
        $region14: #{tpu_custom_call.1} parent=11 // pred_check_branch
          %149 = sbr.rel (%p147) target = $region16
        $region15: #{tpu_custom_call.1} parent=11 // pred_region
          %s151 = ssub.s32 512, 512
          %152 = vsyncadd [#allocation6], %s151
          %s153 = sshll.u32 [#allocation5], 4
          %s154 = int_to_ptr.vmem [resolvable:$true] %s153
          %159 = dma.hbm_to_vmem [thread:$0]  %s1, 512, %s154, [#allocation6], 128, 128, 8
        $region16: #{tpu_custom_call.1} parent=11 // pred_fallthru
          _
        // Predicated region
        $region17: #{tpu_custom_call.1} parent=11 // pred_check
          %p160 = pneg %p85
        $region18: #{tpu_custom_call.1} parent=11 // pred_check_branch
          %162 = sbr.rel (%p160) target = $region20
        $region19: #{tpu_custom_call.1} parent=11 // pred_region
          %s164 = ssub.s32 512, 512
          %165 = vsyncadd [#allocation6], %s164
          %s166 = sshll.u32 [#allocation7], 4
          %s167 = int_to_ptr.vmem [resolvable:$true] %s166
          %172 = dma.hbm_to_vmem [thread:$0]  %s2, 512, %s167, [#allocation6], 128, 128, 8
        $region20: #{tpu_custom_call.1} parent=11 // pred_fallthru
          _
        // Predicated region
        $region21: #{tpu_custom_call.1} parent=11 // pred_check
          %p173 = pneg %p106
        $region22: #{tpu_custom_call.1} parent=11 // pred_check_branch
          %175 = sbr.rel (%p173) target = $region24
        $region23: #{tpu_custom_call.1} parent=11 // pred_region
          _
        $region24: #{tpu_custom_call.1} parent=11 // pred_fallthru
          _
      $region12: #{tpu_custom_call.1} parent=5 // pred_fallthru
        _
      %p176 = scmp.lt.s32.totalorder %s17, 2
      // Predicated region
      $region25: #{tpu_custom_call.1} parent=5 // pred_check
        %p177 = pneg %p176
      $region26: #{tpu_custom_call.1} parent=5 // pred_check_branch
        %179 = sbr.rel (%p177) target = $region28
      $region27: #{tpu_custom_call.1} parent=5 // pred_region
        // Predicated region
        $region29: #{tpu_custom_call.1} parent=27 // pred_check
          %p180 = pneg %p37
        $region30: #{tpu_custom_call.1} parent=27 // pred_check_branch
          %182 = sbr.rel (%p180) target = $region32
        $region31: #{tpu_custom_call.1} parent=27 // pred_region
          %s183 = sand.u32 %s27, 1
          %s184 = scalar_lea.sflag [#allocation3], %s183
          %s185 = sand.u32 %s27, 1
          %s186 = smul.addr %s185, 8
          %s187 = scalar_lea.vmem [#allocation2], %s186
          %s189 = ssub.s32 128, 128
          %190 = vsyncadd %s184, %s189
          %s191 = smul.addr %s17, 128
          %s192 = scalar_lea.hbm %s0, %s191
          %s194 = sshll.u32 %s187, 4
          %s195 = int_to_ptr.vmem [resolvable:$true] %s194
          %197 = dma.hbm_to_vmem [thread:$0]  %s192, 128, %s195, %s184
        $region32: #{tpu_custom_call.1} parent=27 // pred_fallthru
          _
      $region28: #{tpu_custom_call.1} parent=5 // pred_fallthru
        _
      %p198 = scmp.le.s32.totalorder 1, %s17
      %p199 = scmp.lt.s32.totalorder %s17, 3
      %p200 = pnand %p198, %p199
      %p201 = pneg %p200
      // Predicated region
      $region33: #{tpu_custom_call.1} parent=5 // pred_check
        _
      $region34: #{tpu_custom_call.1} parent=5 // pred_check_branch
        %203 = sbr.rel (%p200) target = $region36
      $region35: #{tpu_custom_call.1} parent=5 // pred_region
        %s204 = ssub.s32 %s17, 1
        %s205 = sand.u32 %s30, 1
        %s206 = scalar_lea.sflag [#allocation3], %s205
        %s207 = sand.u32 %s30, 1
        %s208 = smul.addr %s207, 8
        %s209 = scalar_lea.vmem [#allocation2], %s208
        // Predicated region
        $region37: #{tpu_custom_call.1} parent=35 // pred_check
          %p210 = pneg %p43
        $region38: #{tpu_custom_call.1} parent=35 // pred_check_branch
          %212 = sbr.rel (%p210) target = $region40
        $region39: #{tpu_custom_call.1} parent=35 // pred_region
          %213 = dma.done %s206, 128
        $region40: #{tpu_custom_call.1} parent=35 // pred_fallthru
          _
        // Predicated region
        $region41: #{tpu_custom_call.1} parent=35 // pred_check
          %p214 = pneg %p64
        $region42: #{tpu_custom_call.1} parent=35 // pred_check_branch
          %216 = sbr.rel (%p214) target = $region44
        $region43: #{tpu_custom_call.1} parent=35 // pred_region
          %217 = dma.done [#allocation6], 512
        $region44: #{tpu_custom_call.1} parent=35 // pred_fallthru
          _
        // Predicated region
        $region45: #{tpu_custom_call.1} parent=35 // pred_check
          %p218 = pneg %p85
        $region46: #{tpu_custom_call.1} parent=35 // pred_check_branch
          %220 = sbr.rel (%p218) target = $region48
        $region47: #{tpu_custom_call.1} parent=35 // pred_region
          %221 = dma.done [#allocation6], 512
        $region48: #{tpu_custom_call.1} parent=35 // pred_fallthru
          _
        %s222 = sand.u32 %s30, 1
        %s223 = scalar_lea.sflag [#allocation3], %s222
        %s224 = sand.u32 %s30, 1
        %s225 = smul.addr %s224, 8
        %s226 = scalar_lea.vmem [#allocation2], %s225
        %p227 = pneg %p43
        %p228 = pneg %p40
        %p229 = pneg %p64
        %p230 = pneg %p61
        %p231 = pneg %p85
        %p232 = pneg %p82
        %p233 = pneg %p106
        %p234 = pneg %p103
        %p235 = pneg %p132
        %p236 = pneg %p129
        %s237 = sand.u32 %s119, 1
        %s238 = scalar_lea.sflag [#allocation4], %s237
        %s239 = sand.u32 %s119, 1
        %s240 = smul.addr %s239, 8
        %s241 = scalar_lea.vmem [#allocation8], %s240
        %v242 = vld [vmem:[%s209] sm:$0xff]
        %v243 = vld [vmem:[#allocation5] sm:$0xff]
        %v244 = vld [vmem:[#allocation5 + $0x8] sm:$0xff]
        %v245 = vld [vmem:[#allocation5 + $0x10] sm:$0xff]
        %v246 = vld [vmem:[#allocation5 + $0x18] sm:$0xff]
        %vm247 = vcmask 261120
        %v249 = vsel %vm247, %v242, 0
        %251 = vmatprep.subr.mxu0 0.0
        %252 = vmatpush1.msra.mxu0 %v243
        %253 = vmatprep.subr.mxu0 0.0
        %254 = vmatpush1.msra.mxu0 %v244
        %255 = vmatprep.subr.mxu0 0.0
        %256 = vmatpush1.msra.mxu0 %v245
        %257 = vmatprep.subr.mxu0 0.0
        %258 = vmatpush1.msra.mxu0 %v246
        %259 = vmatprep.subr.mxu0 0.0
        %260 = vmatpush1.msra.mxu0 0.0
        %261 = vmatprep.subr.mxu0 0.0
        %262 = vmatpush1.msra.mxu0 0.0
        %263 = vmatprep.subr.mxu0 0.0
        %264 = vmatpush1.msra.mxu0 0.0
        %265 = vmatprep.subr.mxu0 0.0
        %266 = vmatpush1.msra.mxu0 0.0
        %267 = vmatprep.subr.mxu0 0.0
        %268 = vmatpush1.msra.mxu0 0.0
        %269 = vmatprep.subr.mxu0 0.0
        %270 = vmatpush1.msra.mxu0 0.0
        %271 = vmatprep.subr.mxu0 0.0
        %272 = vmatpush1.msra.mxu0 0.0
        %273 = vmatprep.subr.mxu0 0.0
        %274 = vmatpush1.msra.mxu0 0.0
        %275 = vmatprep.subr.mxu0 0.0
        %276 = vmatpush1.msra.mxu0 0.0
        %277 = vmatprep.subr.mxu0 0.0
        %278 = vmatpush1.msra.mxu0 0.0
        %279 = vmatprep.subr.mxu0 0.0
        %280 = vmatpush1.msra.mxu0 0.0
        %281 = vmatprep.subr.mxu0 0.0
        %282 = vmatpush1.msra.mxu0 0.0
        %283 = vmatprep.subr.mxu0 0.0
        %284 = vmatpush1.msra.mxu0 0.0
        %285 = vmatprep.subr.mxu0 0.0
        %286 = vmatpush1.msra.mxu0 0.0
        %287 = vmatprep.subr.mxu0 0.0
        %288 = vmatpush1.msra.mxu0 0.0
        %289 = vmatprep.subr.mxu0 0.0
        %290 = vmatpush1.msra.mxu0 0.0
        %291 = vmatprep.subr.mxu0 0.0
        %292 = vmatpush1.msra.mxu0 0.0
        %293 = vmatprep.subr.mxu0 0.0
        %294 = vmatpush1.msra.mxu0 0.0
        %295 = vmatprep.subr.mxu0 0.0
        %296 = vmatpush1.msra.mxu0 0.0
        %297 = vmatprep.subr.mxu0 0.0
        %298 = vmatpush1.msra.mxu0 0.0
        %299 = vmatprep.subr.mxu0 0.0
        %300 = vmatpush1.msra.mxu0 0.0
        %301 = vmatprep.subr.mxu0 0.0
        %302 = vmatpush1.msra.mxu0 0.0
        %303 = vmatprep.subr.mxu0 0.0
        %304 = vmatpush1.msra.mxu0 0.0
        %305 = vmatprep.subr.mxu0 0.0
        %306 = vmatpush1.msra.mxu0 0.0
        %307 = vmatprep.subr.mxu0 0.0
        %308 = vmatpush1.msra.mxu0 0.0
        %309 = vmatprep.subr.mxu0 0.0
        %310 = vmatpush1.msra.mxu0 0.0
        %311 = vmatprep.subr.mxu0 0.0
        %312 = vmatpush1.msra.mxu0 0.0
        %313 = vmatprep.subr.mxu0 0.0
        %314 = vmatpush1.msra.mxu0 0.0
        %315 = vmatprep.mubr.f32.mxu0 0.0
        %316 = vmatmul.mubr.f32.gmra.mrb[0].mxu0 %v249
        %v317 = vpop.f32.mrb[0].mxu0
        %v318 = vadd.f32 0.0, %v317
        %v319 = vpop.f32.mrb[0].mxu0
        %320 = vdwg.mxu0
        %322 = vrot.lane.b32.xlu0 %v318, 120
        %v323 = vpop.permute.xlu0 %322
        %324 = vrot.lane.b32.xlu0 %v318, 112
        %v325 = vpop.permute.xlu0 %324
        %326 = vrot.lane.b32.xlu0 %v318, 104
        %v327 = vpop.permute.xlu0 %326
        %328 = vrot.lane.b32.xlu0 %v318, 96
        %v329 = vpop.permute.xlu0 %328
        %330 = vrot.lane.b32.xlu0 %v323, 96
        %v331 = vpop.permute.xlu0 %330
        %332 = vrot.lane.b32.xlu0 %v325, 96
        %v333 = vpop.permute.xlu0 %332
        %334 = vrot.lane.b32.xlu0 %v327, 96
        %v335 = vpop.permute.xlu0 %334
        %340 = vxpose.xlu0.b32.start [1/16] %v329, 128
        %341 = vxpose.xlu0.b32.cont [2/16] 0.0, 128
        %342 = vxpose.xlu0.b32.cont [3/16] 0.0, 128
        %343 = vxpose.xlu0.b32.cont [4/16] 0.0, 128
        %344 = vxpose.xlu0.b32.cont [5/16] 0.0, 128
        %345 = vxpose.xlu0.b32.cont [6/16] 0.0, 128
        %346 = vxpose.xlu0.b32.cont [7/16] 0.0, 128
        %347 = vxpose.xlu0.b32.cont [8/16] 0.0, 128
        %348 = vxpose.xlu0.b32.cont [9/16] 0.0, 128
        %349 = vxpose.xlu0.b32.cont [10/16] 0.0, 128
        %350 = vxpose.xlu0.b32.cont [11/16] 0.0, 128
        %351 = vxpose.xlu0.b32.cont [12/16] 0.0, 128
        %352 = vxpose.xlu0.b32.cont [13/16] 0.0, 128
        %353 = vxpose.xlu0.b32.cont [14/16] 0.0, 128
        %354 = vxpose.xlu0.b32.cont [15/16] 0.0, 128
        %355 = vxpose.xlu0.b32.end [16/16] 0.0, 128
        %v356 = vpop.trf.xlu0
        %v357 = vpop.trf.xlu0
        %v358 = vpop.trf.xlu0
        %v359 = vpop.trf.xlu0
        %v360 = vpop.trf.xlu0
        %v361 = vpop.trf.xlu0
        %v362 = vpop.trf.xlu0
        %v363 = vpop.trf.xlu0
        %v364 = vpop.trf.xlu0
        %v365 = vpop.trf.xlu0
        %v366 = vpop.trf.xlu0
        %v367 = vpop.trf.xlu0
        %v368 = vpop.trf.xlu0
        %v369 = vpop.trf.xlu0
        %v370 = vpop.trf.xlu0
        %v371 = vpop.trf.xlu0
        %372 = vxpose.xlu0.b32.start [1/16] %v331, 128
        %373 = vxpose.xlu0.b32.cont [2/16] 0.0, 128
        %374 = vxpose.xlu0.b32.cont [3/16] 0.0, 128
        %375 = vxpose.xlu0.b32.cont [4/16] 0.0, 128
        %376 = vxpose.xlu0.b32.cont [5/16] 0.0, 128
        %377 = vxpose.xlu0.b32.cont [6/16] 0.0, 128
        %378 = vxpose.xlu0.b32.cont [7/16] 0.0, 128
        %379 = vxpose.xlu0.b32.cont [8/16] 0.0, 128
        %380 = vxpose.xlu0.b32.cont [9/16] 0.0, 128
        %381 = vxpose.xlu0.b32.cont [10/16] 0.0, 128
        %382 = vxpose.xlu0.b32.cont [11/16] 0.0, 128
        %383 = vxpose.xlu0.b32.cont [12/16] 0.0, 128
        %384 = vxpose.xlu0.b32.cont [13/16] 0.0, 128
        %385 = vxpose.xlu0.b32.cont [14/16] 0.0, 128
        %386 = vxpose.xlu0.b32.cont [15/16] 0.0, 128
        %387 = vxpose.xlu0.b32.end [16/16] 0.0, 128
        %v388 = vpop.trf.xlu0
        %v389 = vpop.trf.xlu0
        %v390 = vpop.trf.xlu0
        %v391 = vpop.trf.xlu0
        %v392 = vpop.trf.xlu0
        %v393 = vpop.trf.xlu0
        %v394 = vpop.trf.xlu0
        %v395 = vpop.trf.xlu0
        %v396 = vpop.trf.xlu0
        %v397 = vpop.trf.xlu0
        %v398 = vpop.trf.xlu0
        %v399 = vpop.trf.xlu0
        %v400 = vpop.trf.xlu0
        %v401 = vpop.trf.xlu0
        %v402 = vpop.trf.xlu0
        %v403 = vpop.trf.xlu0
        %404 = vxpose.xlu0.b32.start [1/16] %v333, 128
        %405 = vxpose.xlu0.b32.cont [2/16] 0.0, 128
        %406 = vxpose.xlu0.b32.cont [3/16] 0.0, 128
        %407 = vxpose.xlu0.b32.cont [4/16] 0.0, 128
        %408 = vxpose.xlu0.b32.cont [5/16] 0.0, 128
        %409 = vxpose.xlu0.b32.cont [6/16] 0.0, 128
        %410 = vxpose.xlu0.b32.cont [7/16] 0.0, 128
        %411 = vxpose.xlu0.b32.cont [8/16] 0.0, 128
        %412 = vxpose.xlu0.b32.cont [9/16] 0.0, 128
        %413 = vxpose.xlu0.b32.cont [10/16] 0.0, 128
        %414 = vxpose.xlu0.b32.cont [11/16] 0.0, 128
        %415 = vxpose.xlu0.b32.cont [12/16] 0.0, 128
        %416 = vxpose.xlu0.b32.cont [13/16] 0.0, 128
        %417 = vxpose.xlu0.b32.cont [14/16] 0.0, 128
        %418 = vxpose.xlu0.b32.cont [15/16] 0.0, 128
        %419 = vxpose.xlu0.b32.end [16/16] 0.0, 128
        %v420 = vpop.trf.xlu0
        %v421 = vpop.trf.xlu0
        %v422 = vpop.trf.xlu0
        %v423 = vpop.trf.xlu0
        %v424 = vpop.trf.xlu0
        %v425 = vpop.trf.xlu0
        %v426 = vpop.trf.xlu0
        %v427 = vpop.trf.xlu0
        %v428 = vpop.trf.xlu0
        %v429 = vpop.trf.xlu0
        %v430 = vpop.trf.xlu0
        %v431 = vpop.trf.xlu0
        %v432 = vpop.trf.xlu0
        %v433 = vpop.trf.xlu0
        %v434 = vpop.trf.xlu0
        %v435 = vpop.trf.xlu0
        %436 = vxpose.xlu0.b32.start [1/16] %v335, 128
        %437 = vxpose.xlu0.b32.cont [2/16] 0.0, 128
        %438 = vxpose.xlu0.b32.cont [3/16] 0.0, 128
        %439 = vxpose.xlu0.b32.cont [4/16] 0.0, 128
        %440 = vxpose.xlu0.b32.cont [5/16] 0.0, 128
        %441 = vxpose.xlu0.b32.cont [6/16] 0.0, 128
        %442 = vxpose.xlu0.b32.cont [7/16] 0.0, 128
        %443 = vxpose.xlu0.b32.cont [8/16] 0.0, 128
        %444 = vxpose.xlu0.b32.cont [9/16] 0.0, 128
        %445 = vxpose.xlu0.b32.cont [10/16] 0.0, 128
        %446 = vxpose.xlu0.b32.cont [11/16] 0.0, 128
        %447 = vxpose.xlu0.b32.cont [12/16] 0.0, 128
        %448 = vxpose.xlu0.b32.cont [13/16] 0.0, 128
        %449 = vxpose.xlu0.b32.cont [14/16] 0.0, 128
        %450 = vxpose.xlu0.b32.cont [15/16] 0.0, 128
        %451 = vxpose.xlu0.b32.end [16/16] 0.0, 128
        %v452 = vpop.trf.xlu0
        %v453 = vpop.trf.xlu0
        %v454 = vpop.trf.xlu0
        %v455 = vpop.trf.xlu0
        %v456 = vpop.trf.xlu0
        %v457 = vpop.trf.xlu0
        %v458 = vpop.trf.xlu0
        %v459 = vpop.trf.xlu0
        %v460 = vpop.trf.xlu0
        %v461 = vpop.trf.xlu0
        %v462 = vpop.trf.xlu0
        %v463 = vpop.trf.xlu0
        %v464 = vpop.trf.xlu0
        %v465 = vpop.trf.xlu0
        %v466 = vpop.trf.xlu0
        %v467 = vpop.trf.xlu0
        %vm468 = vcmask 64512
        %v469 = vsel %vm468, %v318, 0
        %471 = vmatprep.subr.mxu0 0.0
        %472 = vmatpush1.msra.mxu0 %v356
        %473 = vmatprep.subr.mxu0 0.0
        %474 = vmatpush1.msra.mxu0 0.0
        %475 = vmatprep.subr.mxu0 0.0
        %476 = vmatpush1.msra.mxu0 0.0
        %477 = vmatprep.subr.mxu0 0.0
        %478 = vmatpush1.msra.mxu0 0.0
        %479 = vmatprep.subr.mxu0 0.0
        %480 = vmatpush1.msra.mxu0 0.0
        %481 = vmatprep.subr.mxu0 0.0
        %482 = vmatpush1.msra.mxu0 0.0
        %483 = vmatprep.subr.mxu0 0.0
        %484 = vmatpush1.msra.mxu0 0.0
        %485 = vmatprep.subr.mxu0 0.0
        %486 = vmatpush1.msra.mxu0 0.0
        %487 = vmatprep.subr.mxu0 0.0
        %488 = vmatpush1.msra.mxu0 0.0
        %489 = vmatprep.subr.mxu0 0.0
        %490 = vmatpush1.msra.mxu0 0.0
        %491 = vmatprep.subr.mxu0 0.0
        %492 = vmatpush1.msra.mxu0 0.0
        %493 = vmatprep.subr.mxu0 0.0
        %494 = vmatpush1.msra.mxu0 0.0
        %495 = vmatprep.subr.mxu0 0.0
        %496 = vmatpush1.msra.mxu0 0.0
        %497 = vmatprep.subr.mxu0 0.0
        %498 = vmatpush1.msra.mxu0 0.0
        %499 = vmatprep.subr.mxu0 0.0
        %500 = vmatpush1.msra.mxu0 0.0
        %501 = vmatprep.subr.mxu0 0.0
        %502 = vmatpush1.msra.mxu0 0.0
        %503 = vmatprep.subr.mxu0 0.0
        %504 = vmatpush1.msra.mxu0 0.0
        %505 = vmatprep.subr.mxu0 0.0
        %506 = vmatpush1.msra.mxu0 0.0
        %507 = vmatprep.subr.mxu0 0.0
        %508 = vmatpush1.msra.mxu0 0.0
        %509 = vmatprep.subr.mxu0 0.0
        %510 = vmatpush1.msra.mxu0 0.0
        %511 = vmatprep.subr.mxu0 0.0
        %512 = vmatpush1.msra.mxu0 0.0
        %513 = vmatprep.subr.mxu0 0.0
        %514 = vmatpush1.msra.mxu0 0.0
        %515 = vmatprep.subr.mxu0 0.0
        %516 = vmatpush1.msra.mxu0 0.0
        %517 = vmatprep.subr.mxu0 0.0
        %518 = vmatpush1.msra.mxu0 0.0
        %519 = vmatprep.subr.mxu0 0.0
        %520 = vmatpush1.msra.mxu0 0.0
        %521 = vmatprep.subr.mxu0 0.0
        %522 = vmatpush1.msra.mxu0 0.0
        %523 = vmatprep.subr.mxu0 0.0
        %524 = vmatpush1.msra.mxu0 0.0
        %525 = vmatprep.subr.mxu0 0.0
        %526 = vmatpush1.msra.mxu0 0.0
        %527 = vmatprep.subr.mxu0 0.0
        %528 = vmatpush1.msra.mxu0 0.0
        %529 = vmatprep.subr.mxu0 0.0
        %530 = vmatpush1.msra.mxu0 0.0
        %531 = vmatprep.subr.mxu0 0.0
        %532 = vmatpush1.msra.mxu0 0.0
        %533 = vmatprep.subr.mxu0 0.0
        %534 = vmatpush1.msra.mxu0 0.0
        %535 = vmatprep.mubr.f32.mxu0 0.0
        %536 = vmatmul.mubr.f32.gmra.mrb[0].mxu0 %v469
        %v537 = vpop.f32.mrb[0].mxu0
        %v538 = vadd.f32 0.0, %v537
        %v539 = vpop.f32.mrb[0].mxu0
        %540 = vdwg.mxu0
        %v541 = vsel %vm468, %v323, 0
        %543 = vmatprep.subr.mxu0 0.0
        %544 = vmatpush1.msra.mxu0 %v388
        %545 = vmatprep.subr.mxu0 0.0
        %546 = vmatpush1.msra.mxu0 0.0
        %547 = vmatprep.subr.mxu0 0.0
        %548 = vmatpush1.msra.mxu0 0.0
        %549 = vmatprep.subr.mxu0 0.0
        %550 = vmatpush1.msra.mxu0 0.0
        %551 = vmatprep.subr.mxu0 0.0
        %552 = vmatpush1.msra.mxu0 0.0
        %553 = vmatprep.subr.mxu0 0.0
        %554 = vmatpush1.msra.mxu0 0.0
        %555 = vmatprep.subr.mxu0 0.0
        %556 = vmatpush1.msra.mxu0 0.0
        %557 = vmatprep.subr.mxu0 0.0
        %558 = vmatpush1.msra.mxu0 0.0
        %559 = vmatprep.subr.mxu0 0.0
        %560 = vmatpush1.msra.mxu0 0.0
        %561 = vmatprep.subr.mxu0 0.0
        %562 = vmatpush1.msra.mxu0 0.0
        %563 = vmatprep.subr.mxu0 0.0
        %564 = vmatpush1.msra.mxu0 0.0
        %565 = vmatprep.subr.mxu0 0.0
        %566 = vmatpush1.msra.mxu0 0.0
        %567 = vmatprep.subr.mxu0 0.0
        %568 = vmatpush1.msra.mxu0 0.0
        %569 = vmatprep.subr.mxu0 0.0
        %570 = vmatpush1.msra.mxu0 0.0
        %571 = vmatprep.subr.mxu0 0.0
        %572 = vmatpush1.msra.mxu0 0.0
        %573 = vmatprep.subr.mxu0 0.0
        %574 = vmatpush1.msra.mxu0 0.0
        %575 = vmatprep.subr.mxu0 0.0
        %576 = vmatpush1.msra.mxu0 0.0
        %577 = vmatprep.subr.mxu0 0.0
        %578 = vmatpush1.msra.mxu0 0.0
        %579 = vmatprep.subr.mxu0 0.0
        %580 = vmatpush1.msra.mxu0 0.0
        %581 = vmatprep.subr.mxu0 0.0
        %582 = vmatpush1.msra.mxu0 0.0
        %583 = vmatprep.subr.mxu0 0.0
        %584 = vmatpush1.msra.mxu0 0.0
        %585 = vmatprep.subr.mxu0 0.0
        %586 = vmatpush1.msra.mxu0 0.0
        %587 = vmatprep.subr.mxu0 0.0
        %588 = vmatpush1.msra.mxu0 0.0
        %589 = vmatprep.subr.mxu0 0.0
        %590 = vmatpush1.msra.mxu0 0.0
        %591 = vmatprep.subr.mxu0 0.0
        %592 = vmatpush1.msra.mxu0 0.0
        %593 = vmatprep.subr.mxu0 0.0
        %594 = vmatpush1.msra.mxu0 0.0
        %595 = vmatprep.subr.mxu0 0.0
        %596 = vmatpush1.msra.mxu0 0.0
        %597 = vmatprep.subr.mxu0 0.0
        %598 = vmatpush1.msra.mxu0 0.0
        %599 = vmatprep.subr.mxu0 0.0
        %600 = vmatpush1.msra.mxu0 0.0
        %601 = vmatprep.subr.mxu0 0.0
        %602 = vmatpush1.msra.mxu0 0.0
        %603 = vmatprep.subr.mxu0 0.0
        %604 = vmatpush1.msra.mxu0 0.0
        %605 = vmatprep.subr.mxu0 0.0
        %606 = vmatpush1.msra.mxu0 0.0
        %607 = vmatprep.mubr.f32.mxu0 0.0
        %608 = vmatmul.mubr.f32.gmra.mrb[0].mxu0 %v541
        %v609 = vpop.f32.mrb[0].mxu0
        %v610 = vadd.f32 0.0, %v609
        %v611 = vpop.f32.mrb[0].mxu0
        %612 = vdwg.mxu0
        %v613 = vsel %vm468, %v325, 0
        %615 = vmatprep.subr.mxu0 0.0
        %616 = vmatpush1.msra.mxu0 %v420
        %617 = vmatprep.subr.mxu0 0.0
        %618 = vmatpush1.msra.mxu0 0.0
        %619 = vmatprep.subr.mxu0 0.0
        %620 = vmatpush1.msra.mxu0 0.0
        %621 = vmatprep.subr.mxu0 0.0
        %622 = vmatpush1.msra.mxu0 0.0
        %623 = vmatprep.subr.mxu0 0.0
        %624 = vmatpush1.msra.mxu0 0.0
        %625 = vmatprep.subr.mxu0 0.0
        %626 = vmatpush1.msra.mxu0 0.0
        %627 = vmatprep.subr.mxu0 0.0
        %628 = vmatpush1.msra.mxu0 0.0
        %629 = vmatprep.subr.mxu0 0.0
        %630 = vmatpush1.msra.mxu0 0.0
        %631 = vmatprep.subr.mxu0 0.0
        %632 = vmatpush1.msra.mxu0 0.0
        %633 = vmatprep.subr.mxu0 0.0
        %634 = vmatpush1.msra.mxu0 0.0
        %635 = vmatprep.subr.mxu0 0.0
        %636 = vmatpush1.msra.mxu0 0.0
        %637 = vmatprep.subr.mxu0 0.0
        %638 = vmatpush1.msra.mxu0 0.0
        %639 = vmatprep.subr.mxu0 0.0
        %640 = vmatpush1.msra.mxu0 0.0
        %641 = vmatprep.subr.mxu0 0.0
        %642 = vmatpush1.msra.mxu0 0.0
        %643 = vmatprep.subr.mxu0 0.0
        %644 = vmatpush1.msra.mxu0 0.0
        %645 = vmatprep.subr.mxu0 0.0
        %646 = vmatpush1.msra.mxu0 0.0
        %647 = vmatprep.subr.mxu0 0.0
        %648 = vmatpush1.msra.mxu0 0.0
        %649 = vmatprep.subr.mxu0 0.0
        %650 = vmatpush1.msra.mxu0 0.0
        %651 = vmatprep.subr.mxu0 0.0
        %652 = vmatpush1.msra.mxu0 0.0
        %653 = vmatprep.subr.mxu0 0.0
        %654 = vmatpush1.msra.mxu0 0.0
        %655 = vmatprep.subr.mxu0 0.0
        %656 = vmatpush1.msra.mxu0 0.0
        %657 = vmatprep.subr.mxu0 0.0
        %658 = vmatpush1.msra.mxu0 0.0
        %659 = vmatprep.subr.mxu0 0.0
        %660 = vmatpush1.msra.mxu0 0.0
        %661 = vmatprep.subr.mxu0 0.0
        %662 = vmatpush1.msra.mxu0 0.0
        %663 = vmatprep.subr.mxu0 0.0
        %664 = vmatpush1.msra.mxu0 0.0
        %665 = vmatprep.subr.mxu0 0.0
        %666 = vmatpush1.msra.mxu0 0.0
        %667 = vmatprep.subr.mxu0 0.0
        %668 = vmatpush1.msra.mxu0 0.0
        %669 = vmatprep.subr.mxu0 0.0
        %670 = vmatpush1.msra.mxu0 0.0
        %671 = vmatprep.subr.mxu0 0.0
        %672 = vmatpush1.msra.mxu0 0.0
        %673 = vmatprep.subr.mxu0 0.0
        %674 = vmatpush1.msra.mxu0 0.0
        %675 = vmatprep.subr.mxu0 0.0
        %676 = vmatpush1.msra.mxu0 0.0
        %677 = vmatprep.subr.mxu0 0.0
        %678 = vmatpush1.msra.mxu0 0.0
        %679 = vmatprep.mubr.f32.mxu0 0.0
        %680 = vmatmul.mubr.f32.gmra.mrb[0].mxu0 %v613
        %v681 = vpop.f32.mrb[0].mxu0
        %v682 = vadd.f32 0.0, %v681
        %v683 = vpop.f32.mrb[0].mxu0
        %684 = vdwg.mxu0
        %v685 = vsel %vm468, %v327, 0
        %687 = vmatprep.subr.mxu0 0.0
        %688 = vmatpush1.msra.mxu0 %v452
        %689 = vmatprep.subr.mxu0 0.0
        %690 = vmatpush1.msra.mxu0 0.0
        %691 = vmatprep.subr.mxu0 0.0
        %692 = vmatpush1.msra.mxu0 0.0
        %693 = vmatprep.subr.mxu0 0.0
        %694 = vmatpush1.msra.mxu0 0.0
        %695 = vmatprep.subr.mxu0 0.0
        %696 = vmatpush1.msra.mxu0 0.0
        %697 = vmatprep.subr.mxu0 0.0
        %698 = vmatpush1.msra.mxu0 0.0
        %699 = vmatprep.subr.mxu0 0.0
        %700 = vmatpush1.msra.mxu0 0.0
        %701 = vmatprep.subr.mxu0 0.0
        %702 = vmatpush1.msra.mxu0 0.0
        %703 = vmatprep.subr.mxu0 0.0
        %704 = vmatpush1.msra.mxu0 0.0
        %705 = vmatprep.subr.mxu0 0.0
        %706 = vmatpush1.msra.mxu0 0.0
        %707 = vmatprep.subr.mxu0 0.0
        %708 = vmatpush1.msra.mxu0 0.0
        %709 = vmatprep.subr.mxu0 0.0
        %710 = vmatpush1.msra.mxu0 0.0
        %711 = vmatprep.subr.mxu0 0.0
        %712 = vmatpush1.msra.mxu0 0.0
        %713 = vmatprep.subr.mxu0 0.0
        %714 = vmatpush1.msra.mxu0 0.0
        %715 = vmatprep.subr.mxu0 0.0
        %716 = vmatpush1.msra.mxu0 0.0
        %717 = vmatprep.subr.mxu0 0.0
        %718 = vmatpush1.msra.mxu0 0.0
        %719 = vmatprep.subr.mxu0 0.0
        %720 = vmatpush1.msra.mxu0 0.0
        %721 = vmatprep.subr.mxu0 0.0
        %722 = vmatpush1.msra.mxu0 0.0
        %723 = vmatprep.subr.mxu0 0.0
        %724 = vmatpush1.msra.mxu0 0.0
        %725 = vmatprep.subr.mxu0 0.0
        %726 = vmatpush1.msra.mxu0 0.0
        %727 = vmatprep.subr.mxu0 0.0
        %728 = vmatpush1.msra.mxu0 0.0
        %729 = vmatprep.subr.mxu0 0.0
        %730 = vmatpush1.msra.mxu0 0.0
        %731 = vmatprep.subr.mxu0 0.0
        %732 = vmatpush1.msra.mxu0 0.0
        %733 = vmatprep.subr.mxu0 0.0
        %734 = vmatpush1.msra.mxu0 0.0
        %735 = vmatprep.subr.mxu0 0.0
        %736 = vmatpush1.msra.mxu0 0.0
        %737 = vmatprep.subr.mxu0 0.0
        %738 = vmatpush1.msra.mxu0 0.0
        %739 = vmatprep.subr.mxu0 0.0
        %740 = vmatpush1.msra.mxu0 0.0
        %741 = vmatprep.subr.mxu0 0.0
        %742 = vmatpush1.msra.mxu0 0.0
        %743 = vmatprep.subr.mxu0 0.0
        %744 = vmatpush1.msra.mxu0 0.0
        %745 = vmatprep.subr.mxu0 0.0
        %746 = vmatpush1.msra.mxu0 0.0
        %747 = vmatprep.subr.mxu0 0.0
        %748 = vmatpush1.msra.mxu0 0.0
        %749 = vmatprep.subr.mxu0 0.0
        %750 = vmatpush1.msra.mxu0 0.0
        %751 = vmatprep.mubr.f32.mxu0 0.0
        %752 = vmatmul.mubr.f32.gmra.mrb[0].mxu0 %v685
        %v753 = vpop.f32.mrb[0].mxu0
        %v754 = vadd.f32 0.0, %v753
        %v755 = vpop.f32.mrb[0].mxu0
        %756 = vdwg.mxu0
        %v757 = vlaneseq
        %v758 = vshrl.u32 %v757, 7
        %v759 = vlaneseq
        %v760 = vand.u32 %v759, 127
        %vm761 = vcmp.le.s32.totalorder %v760, %v758
        %v762 = vsel %vm761, 1, 0
        %vm763 = vcmp.eq.s32.totalorder %v762, 1
        %v764 = vsel %vm763, %v538, -1e+30
        %v765 = vsel %vm763, %v610, -1e+30
        %v766 = vsel %vm763, %v682, -1e+30
        %v767 = vsel %vm763, %v754, -1e+30
        %v768 = vsel %vm468, %v764, -inf
        %769 = vmax.xlane.f32.xlu0 %v768
        %v770 = vpop.xlane.xlu0 %769
        %v771 = vsel %vm468, %v765, -inf
        %772 = vmax.xlane.f32.xlu0 %v771
        %v773 = vpop.xlane.xlu0 %772
        %v774 = vsel %vm468, %v766, -inf
        %775 = vmax.xlane.f32.xlu0 %v774
        %v776 = vpop.xlane.xlu0 %775
        %v777 = vsel %vm468, %v767, -inf
        %778 = vmax.xlane.f32.xlu0 %v777
        %v779 = vpop.xlane.xlu0 %778
        %v780 = vsub.f32 %v764, %v770
        %v781 = vsub.f32 %v765, %v773
        %v782 = vsub.f32 %v766, %v776
        %v783 = vsub.f32 %v767, %v779
        %v784 = vmul.f32 %v780, 1.442695
        %v785 = vpow.pop %v784
        %v786 = vmul.f32 %v781, 1.442695
        %v787 = vpow.pop %v786
        %v788 = vmul.f32 %v782, 1.442695
        %v789 = vpow.pop %v788
        %v790 = vmul.f32 %v783, 1.442695
        %v791 = vpow.pop %v790
        %v792 = vsel %vm468, %v785, 0.0
        %793 = vadd.xlane.f32.xlu0 %v792
        %v794 = vpop.xlane.xlu0 %793
        %v795 = vsel %vm468, %v787, 0.0
        %796 = vadd.xlane.f32.xlu0 %v795
        %v797 = vpop.xlane.xlu0 %796
        %v798 = vsel %vm468, %v789, 0.0
        %799 = vadd.xlane.f32.xlu0 %v798
        %v800 = vpop.xlane.xlu0 %799
        %v801 = vsel %vm468, %v791, 0.0
        %802 = vadd.xlane.f32.xlu0 %v801
        %v803 = vpop.xlane.xlu0 %802
        %v804 = vrcp.pop %v794
        %v805 = vrcp.pop %v797
        %v806 = vrcp.pop %v800
        %v807 = vrcp.pop %v803
        %v808 = vmul.f32 %v785, %v804
        %v809 = vmul.f32 %v787, %v805
        %v810 = vmul.f32 %v789, %v806
        %v811 = vmul.f32 %v791, %v807
        %812 = vrot.lane.b32.xlu0 %v318, 64
        %v813 = vpop.permute.xlu0 %812
        %814 = vrot.lane.b32.xlu0 %v323, 64
        %v815 = vpop.permute.xlu0 %814
        %816 = vrot.lane.b32.xlu0 %v325, 64
        %v817 = vpop.permute.xlu0 %816
        %818 = vrot.lane.b32.xlu0 %v327, 64
        %v819 = vpop.permute.xlu0 %818
        %824 = vxpose.xlu0.b32.start [1/16] %v813, 128
        %825 = vxpose.xlu0.b32.cont [2/16] 0.0, 128
        %826 = vxpose.xlu0.b32.cont [3/16] 0.0, 128
        %827 = vxpose.xlu0.b32.cont [4/16] 0.0, 128
        %828 = vxpose.xlu0.b32.cont [5/16] 0.0, 128
        %829 = vxpose.xlu0.b32.cont [6/16] 0.0, 128
        %830 = vxpose.xlu0.b32.cont [7/16] 0.0, 128
        %831 = vxpose.xlu0.b32.cont [8/16] 0.0, 128
        %832 = vxpose.xlu0.b32.cont [9/16] 0.0, 128
        %833 = vxpose.xlu0.b32.cont [10/16] 0.0, 128
        %834 = vxpose.xlu0.b32.cont [11/16] 0.0, 128
        %835 = vxpose.xlu0.b32.cont [12/16] 0.0, 128
        %836 = vxpose.xlu0.b32.cont [13/16] 0.0, 128
        %837 = vxpose.xlu0.b32.cont [14/16] 0.0, 128
        %838 = vxpose.xlu0.b32.cont [15/16] 0.0, 128
        %839 = vxpose.xlu0.b32.end [16/16] 0.0, 128
        %v840 = vpop.trf.xlu0
        %v841 = vpop.trf.xlu0
        %v842 = vpop.trf.xlu0
        %v843 = vpop.trf.xlu0
        %v844 = vpop.trf.xlu0
        %v845 = vpop.trf.xlu0
        %v846 = vpop.trf.xlu0
        %v847 = vpop.trf.xlu0
        %v848 = vpop.trf.xlu0
        %v849 = vpop.trf.xlu0
        %v850 = vpop.trf.xlu0
        %v851 = vpop.trf.xlu0
        %v852 = vpop.trf.xlu0
        %v853 = vpop.trf.xlu0
        %v854 = vpop.trf.xlu0
        %v855 = vpop.trf.xlu0
        %856 = vxpose.xlu0.b32.start [1/16] %v815, 128
        %857 = vxpose.xlu0.b32.cont [2/16] 0.0, 128
        %858 = vxpose.xlu0.b32.cont [3/16] 0.0, 128
        %859 = vxpose.xlu0.b32.cont [4/16] 0.0, 128
        %860 = vxpose.xlu0.b32.cont [5/16] 0.0, 128
        %861 = vxpose.xlu0.b32.cont [6/16] 0.0, 128
        %862 = vxpose.xlu0.b32.cont [7/16] 0.0, 128
        %863 = vxpose.xlu0.b32.cont [8/16] 0.0, 128
        %864 = vxpose.xlu0.b32.cont [9/16] 0.0, 128
        %865 = vxpose.xlu0.b32.cont [10/16] 0.0, 128
        %866 = vxpose.xlu0.b32.cont [11/16] 0.0, 128
        %867 = vxpose.xlu0.b32.cont [12/16] 0.0, 128
        %868 = vxpose.xlu0.b32.cont [13/16] 0.0, 128
        %869 = vxpose.xlu0.b32.cont [14/16] 0.0, 128
        %870 = vxpose.xlu0.b32.cont [15/16] 0.0, 128
        %871 = vxpose.xlu0.b32.end [16/16] 0.0, 128
        %v872 = vpop.trf.xlu0
        %v873 = vpop.trf.xlu0
        %v874 = vpop.trf.xlu0
        %v875 = vpop.trf.xlu0
        %v876 = vpop.trf.xlu0
        %v877 = vpop.trf.xlu0
        %v878 = vpop.trf.xlu0
        %v879 = vpop.trf.xlu0
        %v880 = vpop.trf.xlu0
        %v881 = vpop.trf.xlu0
        %v882 = vpop.trf.xlu0
        %v883 = vpop.trf.xlu0
        %v884 = vpop.trf.xlu0
        %v885 = vpop.trf.xlu0
        %v886 = vpop.trf.xlu0
        %v887 = vpop.trf.xlu0
        %888 = vxpose.xlu0.b32.start [1/16] %v817, 128
        %889 = vxpose.xlu0.b32.cont [2/16] 0.0, 128
        %890 = vxpose.xlu0.b32.cont [3/16] 0.0, 128
        %891 = vxpose.xlu0.b32.cont [4/16] 0.0, 128
        %892 = vxpose.xlu0.b32.cont [5/16] 0.0, 128
        %893 = vxpose.xlu0.b32.cont [6/16] 0.0, 128
        %894 = vxpose.xlu0.b32.cont [7/16] 0.0, 128
        %895 = vxpose.xlu0.b32.cont [8/16] 0.0, 128
        %896 = vxpose.xlu0.b32.cont [9/16] 0.0, 128
        %897 = vxpose.xlu0.b32.cont [10/16] 0.0, 128
        %898 = vxpose.xlu0.b32.cont [11/16] 0.0, 128
        %899 = vxpose.xlu0.b32.cont [12/16] 0.0, 128
        %900 = vxpose.xlu0.b32.cont [13/16] 0.0, 128
        %901 = vxpose.xlu0.b32.cont [14/16] 0.0, 128
        %902 = vxpose.xlu0.b32.cont [15/16] 0.0, 128
        %903 = vxpose.xlu0.b32.end [16/16] 0.0, 128
        %v904 = vpop.trf.xlu0
        %v905 = vpop.trf.xlu0
        %v906 = vpop.trf.xlu0
        %v907 = vpop.trf.xlu0
        %v908 = vpop.trf.xlu0
        %v909 = vpop.trf.xlu0
        %v910 = vpop.trf.xlu0
        %v911 = vpop.trf.xlu0
        %v912 = vpop.trf.xlu0
        %v913 = vpop.trf.xlu0
        %v914 = vpop.trf.xlu0
        %v915 = vpop.trf.xlu0
        %v916 = vpop.trf.xlu0
        %v917 = vpop.trf.xlu0
        %v918 = vpop.trf.xlu0
        %v919 = vpop.trf.xlu0
        %920 = vxpose.xlu0.b32.start [1/16] %v819, 128
        %921 = vxpose.xlu0.b32.cont [2/16] 0.0, 128
        %922 = vxpose.xlu0.b32.cont [3/16] 0.0, 128
        %923 = vxpose.xlu0.b32.cont [4/16] 0.0, 128
        %924 = vxpose.xlu0.b32.cont [5/16] 0.0, 128
        %925 = vxpose.xlu0.b32.cont [6/16] 0.0, 128
        %926 = vxpose.xlu0.b32.cont [7/16] 0.0, 128
        %927 = vxpose.xlu0.b32.cont [8/16] 0.0, 128
        %928 = vxpose.xlu0.b32.cont [9/16] 0.0, 128
        %929 = vxpose.xlu0.b32.cont [10/16] 0.0, 128
        %930 = vxpose.xlu0.b32.cont [11/16] 0.0, 128
        %931 = vxpose.xlu0.b32.cont [12/16] 0.0, 128
        %932 = vxpose.xlu0.b32.cont [13/16] 0.0, 128
        %933 = vxpose.xlu0.b32.cont [14/16] 0.0, 128
        %934 = vxpose.xlu0.b32.cont [15/16] 0.0, 128
        %935 = vxpose.xlu0.b32.end [16/16] 0.0, 128
        %v936 = vpop.trf.xlu0
        %v937 = vpop.trf.xlu0
        %v938 = vpop.trf.xlu0
        %v939 = vpop.trf.xlu0
        %v940 = vpop.trf.xlu0
        %v941 = vpop.trf.xlu0
        %v942 = vpop.trf.xlu0
        %v943 = vpop.trf.xlu0
        %v944 = vpop.trf.xlu0
        %v945 = vpop.trf.xlu0
        %v946 = vpop.trf.xlu0
        %v947 = vpop.trf.xlu0
        %v948 = vpop.trf.xlu0
        %v949 = vpop.trf.xlu0
        %v950 = vpop.trf.xlu0
        %v951 = vpop.trf.xlu0
        %v953 = vsel %vm468, %v840, 0
        %v956 = vsel %vm468, %v808, 0
        %958 = vmatprep.subr.mxu0 0.0
        %959 = vmatpush1.xpose.msra.mxu0 %v956
        %960 = vmatprep.subr.mxu0 0.0
        %961 = vmatpush1.xpose.msra.mxu0 0.0
        %962 = vmatprep.subr.mxu0 0.0
        %963 = vmatpush1.xpose.msra.mxu0 0.0
        %964 = vmatprep.subr.mxu0 0.0
        %965 = vmatpush1.xpose.msra.mxu0 0.0
        %966 = vmatprep.subr.mxu0 0.0
        %967 = vmatpush1.xpose.msra.mxu0 0.0
        %968 = vmatprep.subr.mxu0 0.0
        %969 = vmatpush1.xpose.msra.mxu0 0.0
        %970 = vmatprep.subr.mxu0 0.0
        %971 = vmatpush1.xpose.msra.mxu0 0.0
        %972 = vmatprep.subr.mxu0 0.0
        %973 = vmatpush1.xpose.msra.mxu0 0.0
        %974 = vmatprep.subr.mxu0 0.0
        %975 = vmatpush1.xpose.msra.mxu0 0.0
        %976 = vmatprep.subr.mxu0 0.0
        %977 = vmatpush1.xpose.msra.mxu0 0.0
        %978 = vmatprep.subr.mxu0 0.0
        %979 = vmatpush1.xpose.msra.mxu0 0.0
        %980 = vmatprep.subr.mxu0 0.0
        %981 = vmatpush1.xpose.msra.mxu0 0.0
        %982 = vmatprep.subr.mxu0 0.0
        %983 = vmatpush1.xpose.msra.mxu0 0.0
        %984 = vmatprep.subr.mxu0 0.0
        %985 = vmatpush1.xpose.msra.mxu0 0.0
        %986 = vmatprep.subr.mxu0 0.0
        %987 = vmatpush1.xpose.msra.mxu0 0.0
        %988 = vmatprep.subr.mxu0 0.0
        %989 = vmatpush1.xpose.msra.mxu0 0.0
        %990 = vmatprep.subr.mxu0 0.0
        %991 = vmatpush1.xpose.msra.mxu0 0.0
        %992 = vmatprep.subr.mxu0 0.0
        %993 = vmatpush1.xpose.msra.mxu0 0.0
        %994 = vmatprep.subr.mxu0 0.0
        %995 = vmatpush1.xpose.msra.mxu0 0.0
        %996 = vmatprep.subr.mxu0 0.0
        %997 = vmatpush1.xpose.msra.mxu0 0.0
        %998 = vmatprep.subr.mxu0 0.0
        %999 = vmatpush1.xpose.msra.mxu0 0.0
        %1000 = vmatprep.subr.mxu0 0.0
        %1001 = vmatpush1.xpose.msra.mxu0 0.0
        %1002 = vmatprep.subr.mxu0 0.0
        %1003 = vmatpush1.xpose.msra.mxu0 0.0
        %1004 = vmatprep.subr.mxu0 0.0
        %1005 = vmatpush1.xpose.msra.mxu0 0.0
        %1006 = vmatprep.subr.mxu0 0.0
        %1007 = vmatpush1.xpose.msra.mxu0 0.0
        %1008 = vmatprep.subr.mxu0 0.0
        %1009 = vmatpush1.xpose.msra.mxu0 0.0
        %1010 = vmatprep.subr.mxu0 0.0
        %1011 = vmatpush1.xpose.msra.mxu0 0.0
        %1012 = vmatprep.subr.mxu0 0.0
        %1013 = vmatpush1.xpose.msra.mxu0 0.0
        %1014 = vmatprep.subr.mxu0 0.0
        %1015 = vmatpush1.xpose.msra.mxu0 0.0
        %1016 = vmatprep.subr.mxu0 0.0
        %1017 = vmatpush1.xpose.msra.mxu0 0.0
        %1018 = vmatprep.subr.mxu0 0.0
        %1019 = vmatpush1.xpose.msra.mxu0 0.0
        %1020 = vmatprep.subr.mxu0 0.0
        %1021 = vmatpush1.xpose.msra.mxu0 0.0
        %1022 = vmatprep.mubr.f32.mxu0 0.0
        %1023 = vmatmul.mubr.f32.gmra.mrb[0].mxu0 %v953
        %v1024 = vpop.f32.mrb[0].mxu0
        %v1025 = vadd.f32 0.0, %v1024
        %v1026 = vpop.f32.mrb[0].mxu0
        %1027 = vdwg.mxu0
        %v1029 = vsel %vm468, %v872, 0
        %v1032 = vsel %vm468, %v809, 0
        %1034 = vmatprep.subr.mxu0 0.0
        %1035 = vmatpush1.xpose.msra.mxu0 %v1032
        %1036 = vmatprep.subr.mxu0 0.0
        %1037 = vmatpush1.xpose.msra.mxu0 0.0
        %1038 = vmatprep.subr.mxu0 0.0
        %1039 = vmatpush1.xpose.msra.mxu0 0.0
        %1040 = vmatprep.subr.mxu0 0.0
        %1041 = vmatpush1.xpose.msra.mxu0 0.0
        %1042 = vmatprep.subr.mxu0 0.0
        %1043 = vmatpush1.xpose.msra.mxu0 0.0
        %1044 = vmatprep.subr.mxu0 0.0
        %1045 = vmatpush1.xpose.msra.mxu0 0.0
        %1046 = vmatprep.subr.mxu0 0.0
        %1047 = vmatpush1.xpose.msra.mxu0 0.0
        %1048 = vmatprep.subr.mxu0 0.0
        %1049 = vmatpush1.xpose.msra.mxu0 0.0
        %1050 = vmatprep.subr.mxu0 0.0
        %1051 = vmatpush1.xpose.msra.mxu0 0.0
        %1052 = vmatprep.subr.mxu0 0.0
        %1053 = vmatpush1.xpose.msra.mxu0 0.0
        %1054 = vmatprep.subr.mxu0 0.0
        %1055 = vmatpush1.xpose.msra.mxu0 0.0
        %1056 = vmatprep.subr.mxu0 0.0
        %1057 = vmatpush1.xpose.msra.mxu0 0.0
        %1058 = vmatprep.subr.mxu0 0.0
        %1059 = vmatpush1.xpose.msra.mxu0 0.0
        %1060 = vmatprep.subr.mxu0 0.0
        %1061 = vmatpush1.xpose.msra.mxu0 0.0
        %1062 = vmatprep.subr.mxu0 0.0
        %1063 = vmatpush1.xpose.msra.mxu0 0.0
        %1064 = vmatprep.subr.mxu0 0.0
        %1065 = vmatpush1.xpose.msra.mxu0 0.0
        %1066 = vmatprep.subr.mxu0 0.0
        %1067 = vmatpush1.xpose.msra.mxu0 0.0
        %1068 = vmatprep.subr.mxu0 0.0
        %1069 = vmatpush1.xpose.msra.mxu0 0.0
        %1070 = vmatprep.subr.mxu0 0.0
        %1071 = vmatpush1.xpose.msra.mxu0 0.0
        %1072 = vmatprep.subr.mxu0 0.0
        %1073 = vmatpush1.xpose.msra.mxu0 0.0
        %1074 = vmatprep.subr.mxu0 0.0
        %1075 = vmatpush1.xpose.msra.mxu0 0.0
        %1076 = vmatprep.subr.mxu0 0.0
        %1077 = vmatpush1.xpose.msra.mxu0 0.0
        %1078 = vmatprep.subr.mxu0 0.0
        %1079 = vmatpush1.xpose.msra.mxu0 0.0
        %1080 = vmatprep.subr.mxu0 0.0
        %1081 = vmatpush1.xpose.msra.mxu0 0.0
        %1082 = vmatprep.subr.mxu0 0.0
        %1083 = vmatpush1.xpose.msra.mxu0 0.0
        %1084 = vmatprep.subr.mxu0 0.0
        %1085 = vmatpush1.xpose.msra.mxu0 0.0
        %1086 = vmatprep.subr.mxu0 0.0
        %1087 = vmatpush1.xpose.msra.mxu0 0.0
        %1088 = vmatprep.subr.mxu0 0.0
        %1089 = vmatpush1.xpose.msra.mxu0 0.0
        %1090 = vmatprep.subr.mxu0 0.0
        %1091 = vmatpush1.xpose.msra.mxu0 0.0
        %1092 = vmatprep.subr.mxu0 0.0
        %1093 = vmatpush1.xpose.msra.mxu0 0.0
        %1094 = vmatprep.subr.mxu0 0.0
        %1095 = vmatpush1.xpose.msra.mxu0 0.0
        %1096 = vmatprep.subr.mxu0 0.0
        %1097 = vmatpush1.xpose.msra.mxu0 0.0
        %1098 = vmatprep.mubr.f32.mxu0 0.0
        %1099 = vmatmul.mubr.f32.gmra.mrb[0].mxu0 %v1029
        %v1100 = vpop.f32.mrb[0].mxu0
        %v1101 = vadd.f32 0.0, %v1100
        %v1102 = vpop.f32.mrb[0].mxu0
        %1103 = vdwg.mxu0
        %v1105 = vsel %vm468, %v904, 0
        %v1108 = vsel %vm468, %v810, 0
        %1110 = vmatprep.subr.mxu0 0.0
        %1111 = vmatpush1.xpose.msra.mxu0 %v1108
        %1112 = vmatprep.subr.mxu0 0.0
        %1113 = vmatpush1.xpose.msra.mxu0 0.0
        %1114 = vmatprep.subr.mxu0 0.0
        %1115 = vmatpush1.xpose.msra.mxu0 0.0
        %1116 = vmatprep.subr.mxu0 0.0
        %1117 = vmatpush1.xpose.msra.mxu0 0.0
        %1118 = vmatprep.subr.mxu0 0.0
        %1119 = vmatpush1.xpose.msra.mxu0 0.0
        %1120 = vmatprep.subr.mxu0 0.0
        %1121 = vmatpush1.xpose.msra.mxu0 0.0
        %1122 = vmatprep.subr.mxu0 0.0
        %1123 = vmatpush1.xpose.msra.mxu0 0.0
        %1124 = vmatprep.subr.mxu0 0.0
        %1125 = vmatpush1.xpose.msra.mxu0 0.0
        %1126 = vmatprep.subr.mxu0 0.0
        %1127 = vmatpush1.xpose.msra.mxu0 0.0
        %1128 = vmatprep.subr.mxu0 0.0
        %1129 = vmatpush1.xpose.msra.mxu0 0.0
        %1130 = vmatprep.subr.mxu0 0.0
        %1131 = vmatpush1.xpose.msra.mxu0 0.0
        %1132 = vmatprep.subr.mxu0 0.0
        %1133 = vmatpush1.xpose.msra.mxu0 0.0
        %1134 = vmatprep.subr.mxu0 0.0
        %1135 = vmatpush1.xpose.msra.mxu0 0.0
        %1136 = vmatprep.subr.mxu0 0.0
        %1137 = vmatpush1.xpose.msra.mxu0 0.0
        %1138 = vmatprep.subr.mxu0 0.0
        %1139 = vmatpush1.xpose.msra.mxu0 0.0
        %1140 = vmatprep.subr.mxu0 0.0
        %1141 = vmatpush1.xpose.msra.mxu0 0.0
        %1142 = vmatprep.subr.mxu0 0.0
        %1143 = vmatpush1.xpose.msra.mxu0 0.0
        %1144 = vmatprep.subr.mxu0 0.0
        %1145 = vmatpush1.xpose.msra.mxu0 0.0
        %1146 = vmatprep.subr.mxu0 0.0
        %1147 = vmatpush1.xpose.msra.mxu0 0.0
        %1148 = vmatprep.subr.mxu0 0.0
        %1149 = vmatpush1.xpose.msra.mxu0 0.0
        %1150 = vmatprep.subr.mxu0 0.0
        %1151 = vmatpush1.xpose.msra.mxu0 0.0
        %1152 = vmatprep.subr.mxu0 0.0
        %1153 = vmatpush1.xpose.msra.mxu0 0.0
        %1154 = vmatprep.subr.mxu0 0.0
        %1155 = vmatpush1.xpose.msra.mxu0 0.0
        %1156 = vmatprep.subr.mxu0 0.0
        %1157 = vmatpush1.xpose.msra.mxu0 0.0
        %1158 = vmatprep.subr.mxu0 0.0
        %1159 = vmatpush1.xpose.msra.mxu0 0.0
        %1160 = vmatprep.subr.mxu0 0.0
        %1161 = vmatpush1.xpose.msra.mxu0 0.0
        %1162 = vmatprep.subr.mxu0 0.0
        %1163 = vmatpush1.xpose.msra.mxu0 0.0
        %1164 = vmatprep.subr.mxu0 0.0
        %1165 = vmatpush1.xpose.msra.mxu0 0.0
        %1166 = vmatprep.subr.mxu0 0.0
        %1167 = vmatpush1.xpose.msra.mxu0 0.0
        %1168 = vmatprep.subr.mxu0 0.0
        %1169 = vmatpush1.xpose.msra.mxu0 0.0
        %1170 = vmatprep.subr.mxu0 0.0
        %1171 = vmatpush1.xpose.msra.mxu0 0.0
        %1172 = vmatprep.subr.mxu0 0.0
        %1173 = vmatpush1.xpose.msra.mxu0 0.0
        %1174 = vmatprep.mubr.f32.mxu0 0.0
        %1175 = vmatmul.mubr.f32.gmra.mrb[0].mxu0 %v1105
        %v1176 = vpop.f32.mrb[0].mxu0
        %v1177 = vadd.f32 0.0, %v1176
        %v1178 = vpop.f32.mrb[0].mxu0
        %1179 = vdwg.mxu0
        %v1181 = vsel %vm468, %v936, 0
        %v1184 = vsel %vm468, %v811, 0
        %1186 = vmatprep.subr.mxu0 0.0
        %1187 = vmatpush1.xpose.msra.mxu0 %v1184
        %1188 = vmatprep.subr.mxu0 0.0
        %1189 = vmatpush1.xpose.msra.mxu0 0.0
        %1190 = vmatprep.subr.mxu0 0.0
        %1191 = vmatpush1.xpose.msra.mxu0 0.0
        %1192 = vmatprep.subr.mxu0 0.0
        %1193 = vmatpush1.xpose.msra.mxu0 0.0
        %1194 = vmatprep.subr.mxu0 0.0
        %1195 = vmatpush1.xpose.msra.mxu0 0.0
        %1196 = vmatprep.subr.mxu0 0.0
        %1197 = vmatpush1.xpose.msra.mxu0 0.0
        %1198 = vmatprep.subr.mxu0 0.0
        %1199 = vmatpush1.xpose.msra.mxu0 0.0
        %1200 = vmatprep.subr.mxu0 0.0
        %1201 = vmatpush1.xpose.msra.mxu0 0.0
        %1202 = vmatprep.subr.mxu0 0.0
        %1203 = vmatpush1.xpose.msra.mxu0 0.0
        %1204 = vmatprep.subr.mxu0 0.0
        %1205 = vmatpush1.xpose.msra.mxu0 0.0
        %1206 = vmatprep.subr.mxu0 0.0
        %1207 = vmatpush1.xpose.msra.mxu0 0.0
        %1208 = vmatprep.subr.mxu0 0.0
        %1209 = vmatpush1.xpose.msra.mxu0 0.0
        %1210 = vmatprep.subr.mxu0 0.0
        %1211 = vmatpush1.xpose.msra.mxu0 0.0
        %1212 = vmatprep.subr.mxu0 0.0
        %1213 = vmatpush1.xpose.msra.mxu0 0.0
        %1214 = vmatprep.subr.mxu0 0.0
        %1215 = vmatpush1.xpose.msra.mxu0 0.0
        %1216 = vmatprep.subr.mxu0 0.0
        %1217 = vmatpush1.xpose.msra.mxu0 0.0
        %1218 = vmatprep.subr.mxu0 0.0
        %1219 = vmatpush1.xpose.msra.mxu0 0.0
        %1220 = vmatprep.subr.mxu0 0.0
        %1221 = vmatpush1.xpose.msra.mxu0 0.0
        %1222 = vmatprep.subr.mxu0 0.0
        %1223 = vmatpush1.xpose.msra.mxu0 0.0
        %1224 = vmatprep.subr.mxu0 0.0
        %1225 = vmatpush1.xpose.msra.mxu0 0.0
        %1226 = vmatprep.subr.mxu0 0.0
        %1227 = vmatpush1.xpose.msra.mxu0 0.0
        %1228 = vmatprep.subr.mxu0 0.0
        %1229 = vmatpush1.xpose.msra.mxu0 0.0
        %1230 = vmatprep.subr.mxu0 0.0
        %1231 = vmatpush1.xpose.msra.mxu0 0.0
        %1232 = vmatprep.subr.mxu0 0.0
        %1233 = vmatpush1.xpose.msra.mxu0 0.0
        %1234 = vmatprep.subr.mxu0 0.0
        %1235 = vmatpush1.xpose.msra.mxu0 0.0
        %1236 = vmatprep.subr.mxu0 0.0
        %1237 = vmatpush1.xpose.msra.mxu0 0.0
        %1238 = vmatprep.subr.mxu0 0.0
        %1239 = vmatpush1.xpose.msra.mxu0 0.0
        %1240 = vmatprep.subr.mxu0 0.0
        %1241 = vmatpush1.xpose.msra.mxu0 0.0
        %1242 = vmatprep.subr.mxu0 0.0
        %1243 = vmatpush1.xpose.msra.mxu0 0.0
        %1244 = vmatprep.subr.mxu0 0.0
        %1245 = vmatpush1.xpose.msra.mxu0 0.0
        %1246 = vmatprep.subr.mxu0 0.0
        %1247 = vmatpush1.xpose.msra.mxu0 0.0
        %1248 = vmatprep.subr.mxu0 0.0
        %1249 = vmatpush1.xpose.msra.mxu0 0.0
        %1250 = vmatprep.mubr.f32.mxu0 0.0
        %1251 = vmatmul.mubr.f32.gmra.mrb[0].mxu0 %v1181
        %v1252 = vpop.f32.mrb[0].mxu0
        %v1253 = vadd.f32 0.0, %v1252
        %v1254 = vpop.f32.mrb[0].mxu0
        %1255 = vdwg.mxu0
        %1256 = vxpose.xlu0.b32.start [1/16] %v1025, 128
        %1257 = vxpose.xlu0.b32.cont [2/16] 0.0, 128
        %1258 = vxpose.xlu0.b32.cont [3/16] 0.0, 128
        %1259 = vxpose.xlu0.b32.cont [4/16] 0.0, 128
        %1260 = vxpose.xlu0.b32.cont [5/16] 0.0, 128
        %1261 = vxpose.xlu0.b32.cont [6/16] 0.0, 128
        %1262 = vxpose.xlu0.b32.cont [7/16] 0.0, 128
        %1263 = vxpose.xlu0.b32.cont [8/16] 0.0, 128
        %1264 = vxpose.xlu0.b32.cont [9/16] 0.0, 128
        %1265 = vxpose.xlu0.b32.cont [10/16] 0.0, 128
        %1266 = vxpose.xlu0.b32.cont [11/16] 0.0, 128
        %1267 = vxpose.xlu0.b32.cont [12/16] 0.0, 128
        %1268 = vxpose.xlu0.b32.cont [13/16] 0.0, 128
        %1269 = vxpose.xlu0.b32.cont [14/16] 0.0, 128
        %1270 = vxpose.xlu0.b32.cont [15/16] 0.0, 128
        %1271 = vxpose.xlu0.b32.end [16/16] 0.0, 128
        %v1272 = vpop.trf.xlu0
        %v1273 = vpop.trf.xlu0
        %v1274 = vpop.trf.xlu0
        %v1275 = vpop.trf.xlu0
        %v1276 = vpop.trf.xlu0
        %v1277 = vpop.trf.xlu0
        %v1278 = vpop.trf.xlu0
        %v1279 = vpop.trf.xlu0
        %v1280 = vpop.trf.xlu0
        %v1281 = vpop.trf.xlu0
        %v1282 = vpop.trf.xlu0
        %v1283 = vpop.trf.xlu0
        %v1284 = vpop.trf.xlu0
        %v1285 = vpop.trf.xlu0
        %v1286 = vpop.trf.xlu0
        %v1287 = vpop.trf.xlu0
        %1288 = vxpose.xlu0.b32.start [1/16] %v1101, 128
        %1289 = vxpose.xlu0.b32.cont [2/16] 0.0, 128
        %1290 = vxpose.xlu0.b32.cont [3/16] 0.0, 128
        %1291 = vxpose.xlu0.b32.cont [4/16] 0.0, 128
        %1292 = vxpose.xlu0.b32.cont [5/16] 0.0, 128
        %1293 = vxpose.xlu0.b32.cont [6/16] 0.0, 128
        %1294 = vxpose.xlu0.b32.cont [7/16] 0.0, 128
        %1295 = vxpose.xlu0.b32.cont [8/16] 0.0, 128
        %1296 = vxpose.xlu0.b32.cont [9/16] 0.0, 128
        %1297 = vxpose.xlu0.b32.cont [10/16] 0.0, 128
        %1298 = vxpose.xlu0.b32.cont [11/16] 0.0, 128
        %1299 = vxpose.xlu0.b32.cont [12/16] 0.0, 128
        %1300 = vxpose.xlu0.b32.cont [13/16] 0.0, 128
        %1301 = vxpose.xlu0.b32.cont [14/16] 0.0, 128
        %1302 = vxpose.xlu0.b32.cont [15/16] 0.0, 128
        %1303 = vxpose.xlu0.b32.end [16/16] 0.0, 128
        %v1304 = vpop.trf.xlu0
        %v1305 = vpop.trf.xlu0
        %v1306 = vpop.trf.xlu0
        %v1307 = vpop.trf.xlu0
        %v1308 = vpop.trf.xlu0
        %v1309 = vpop.trf.xlu0
        %v1310 = vpop.trf.xlu0
        %v1311 = vpop.trf.xlu0
        %v1312 = vpop.trf.xlu0
        %v1313 = vpop.trf.xlu0
        %v1314 = vpop.trf.xlu0
        %v1315 = vpop.trf.xlu0
        %v1316 = vpop.trf.xlu0
        %v1317 = vpop.trf.xlu0
        %v1318 = vpop.trf.xlu0
        %v1319 = vpop.trf.xlu0
        %1320 = vxpose.xlu0.b32.start [1/16] %v1177, 128
        %1321 = vxpose.xlu0.b32.cont [2/16] 0.0, 128
        %1322 = vxpose.xlu0.b32.cont [3/16] 0.0, 128
        %1323 = vxpose.xlu0.b32.cont [4/16] 0.0, 128
        %1324 = vxpose.xlu0.b32.cont [5/16] 0.0, 128
        %1325 = vxpose.xlu0.b32.cont [6/16] 0.0, 128
        %1326 = vxpose.xlu0.b32.cont [7/16] 0.0, 128
        %1327 = vxpose.xlu0.b32.cont [8/16] 0.0, 128
        %1328 = vxpose.xlu0.b32.cont [9/16] 0.0, 128
        %1329 = vxpose.xlu0.b32.cont [10/16] 0.0, 128
        %1330 = vxpose.xlu0.b32.cont [11/16] 0.0, 128
        %1331 = vxpose.xlu0.b32.cont [12/16] 0.0, 128
        %1332 = vxpose.xlu0.b32.cont [13/16] 0.0, 128
        %1333 = vxpose.xlu0.b32.cont [14/16] 0.0, 128
        %1334 = vxpose.xlu0.b32.cont [15/16] 0.0, 128
        %1335 = vxpose.xlu0.b32.end [16/16] 0.0, 128
        %v1336 = vpop.trf.xlu0
        %v1337 = vpop.trf.xlu0
        %v1338 = vpop.trf.xlu0
        %v1339 = vpop.trf.xlu0
        %v1340 = vpop.trf.xlu0
        %v1341 = vpop.trf.xlu0
        %v1342 = vpop.trf.xlu0
        %v1343 = vpop.trf.xlu0
        %v1344 = vpop.trf.xlu0
        %v1345 = vpop.trf.xlu0
        %v1346 = vpop.trf.xlu0
        %v1347 = vpop.trf.xlu0
        %v1348 = vpop.trf.xlu0
        %v1349 = vpop.trf.xlu0
        %v1350 = vpop.trf.xlu0
        %v1351 = vpop.trf.xlu0
        %1352 = vxpose.xlu0.b32.start [1/16] %v1253, 128
        %1353 = vxpose.xlu0.b32.cont [2/16] 0.0, 128
        %1354 = vxpose.xlu0.b32.cont [3/16] 0.0, 128
        %1355 = vxpose.xlu0.b32.cont [4/16] 0.0, 128
        %1356 = vxpose.xlu0.b32.cont [5/16] 0.0, 128
        %1357 = vxpose.xlu0.b32.cont [6/16] 0.0, 128
        %1358 = vxpose.xlu0.b32.cont [7/16] 0.0, 128
        %1359 = vxpose.xlu0.b32.cont [8/16] 0.0, 128
        %1360 = vxpose.xlu0.b32.cont [9/16] 0.0, 128
        %1361 = vxpose.xlu0.b32.cont [10/16] 0.0, 128
        %1362 = vxpose.xlu0.b32.cont [11/16] 0.0, 128
        %1363 = vxpose.xlu0.b32.cont [12/16] 0.0, 128
        %1364 = vxpose.xlu0.b32.cont [13/16] 0.0, 128
        %1365 = vxpose.xlu0.b32.cont [14/16] 0.0, 128
        %1366 = vxpose.xlu0.b32.cont [15/16] 0.0, 128
        %1367 = vxpose.xlu0.b32.end [16/16] 0.0, 128
        %v1368 = vpop.trf.xlu0
        %v1369 = vpop.trf.xlu0
        %v1370 = vpop.trf.xlu0
        %v1371 = vpop.trf.xlu0
        %v1372 = vpop.trf.xlu0
        %v1373 = vpop.trf.xlu0
        %v1374 = vpop.trf.xlu0
        %v1375 = vpop.trf.xlu0
        %v1376 = vpop.trf.xlu0
        %v1377 = vpop.trf.xlu0
        %v1378 = vpop.trf.xlu0
        %v1379 = vpop.trf.xlu0
        %v1380 = vpop.trf.xlu0
        %v1381 = vpop.trf.xlu0
        %v1382 = vpop.trf.xlu0
        %v1383 = vpop.trf.xlu0
        %v1384 = vcombine.low %v1272, %v1336
        %v1385 = vcombine.high %v1272, %v1336
        %v1387 = vunpack.c.l.s4 1983009808
        %v1388 = vunpack.c.0.s8 %v1387
        %v1389 = vlaneseq
        %v1390 = vshrl.u32 %v1389, 7
        %v1391 = vsub.s32 %v1388, %v1390
        %v1392 = vrot.slane %v1384, %v1391
        %v1394 = vunpack.c.l.s4 1983009808
        %v1395 = vunpack.c.0.s8 %v1394
        %v1396 = vlaneseq
        %v1397 = vshrl.u32 %v1396, 7
        %v1398 = vsub.s32 %v1395, %v1397
        %v1399 = vrot.slane %v1385, %v1398
        %v1400 = vcombine.low %v1304, %v1368
        %v1401 = vcombine.high %v1304, %v1368
        %v1403 = vunpack.c.l.s4 1983009808
        %v1404 = vunpack.c.0.s8 %v1403
        %v1405 = vlaneseq
        %v1406 = vshrl.u32 %v1405, 7
        %v1407 = vsub.s32 %v1404, %v1406
        %v1408 = vrot.slane %v1400, %v1407
        %v1410 = vunpack.c.l.s4 1983009808
        %v1411 = vunpack.c.0.s8 %v1410
        %v1412 = vlaneseq
        %v1413 = vshrl.u32 %v1412, 7
        %v1414 = vsub.s32 %v1411, %v1413
        %v1415 = vrot.slane %v1401, %v1414
        %v1416 = vcombine.low %v1392, %v1408
        %v1417 = vcombine.high %v1392, %v1408
        %v1419 = vunpack.c.l.s4 1934713408
        %v1420 = vunpack.c.0.s8 %v1419
        %v1421 = vlaneseq
        %v1422 = vshrl.u32 %v1421, 7
        %v1423 = vsub.s32 %v1420, %v1422
        %v1424 = vrot.slane %v1416, %v1423
        %v1426 = vunpack.c.l.s4 1934713408
        %v1427 = vunpack.c.0.s8 %v1426
        %v1428 = vlaneseq
        %v1429 = vshrl.u32 %v1428, 7
        %v1430 = vsub.s32 %v1427, %v1429
        %v1431 = vrot.slane %v1417, %v1430
        %v1432 = vcombine.low %v1399, %v1415
        %v1433 = vcombine.high %v1399, %v1415
        %v1435 = vunpack.c.l.s4 1934713408
        %v1436 = vunpack.c.0.s8 %v1435
        %v1437 = vlaneseq
        %v1438 = vshrl.u32 %v1437, 7
        %v1439 = vsub.s32 %v1436, %v1438
        %v1440 = vrot.slane %v1432, %v1439
        %v1442 = vunpack.c.l.s4 1934713408
        %v1443 = vunpack.c.0.s8 %v1442
        %v1444 = vlaneseq
        %v1445 = vshrl.u32 %v1444, 7
        %v1446 = vsub.s32 %v1443, %v1445
        %v1447 = vrot.slane %v1433, %v1446
        %v1448 = vcombine.high %v1424, 0.0
        %v1449 = vcombine.high %v1431, 0.0
        %v1450 = vcombine.high %v1440, 0.0
        %v1451 = vcombine.high %v1447, 0.0
        %v1452 = vcombine.low %v1424, %v1431
        %v1454 = vunpack.c.l.s4 1983009808
        %v1455 = vunpack.c.0.s8 %v1454
        %v1456 = vlaneseq
        %v1457 = vshrl.u32 %v1456, 7
        %v1458 = vsub.s32 %v1455, %v1457
        %v1459 = vrot.slane %v1452, %v1458
        %v1460 = vcombine.low %v1448, %v1449
        %v1462 = vunpack.c.l.s4 1983009808
        %v1463 = vunpack.c.0.s8 %v1462
        %v1464 = vlaneseq
        %v1465 = vshrl.u32 %v1464, 7
        %v1466 = vsub.s32 %v1463, %v1465
        %v1467 = vrot.slane %v1460, %v1466
        %v1468 = vcombine.low %v1440, %v1447
        %v1470 = vunpack.c.l.s4 1983009808
        %v1471 = vunpack.c.0.s8 %v1470
        %v1472 = vlaneseq
        %v1473 = vshrl.u32 %v1472, 7
        %v1474 = vsub.s32 %v1471, %v1473
        %v1475 = vrot.slane %v1468, %v1474
        %v1476 = vcombine.low %v1450, %v1451
        %v1478 = vunpack.c.l.s4 1983009808
        %v1479 = vunpack.c.0.s8 %v1478
        %v1480 = vlaneseq
        %v1481 = vshrl.u32 %v1480, 7
        %v1482 = vsub.s32 %v1479, %v1481
        %v1483 = vrot.slane %v1476, %v1482
        %v1484 = vcombine.low %v1459, %v1467
        %v1485 = vcombine.high %v1459, %v1467
        %v1487 = vunpack.c.l.s4 1934713408
        %v1488 = vunpack.c.0.s8 %v1487
        %v1489 = vlaneseq
        %v1490 = vshrl.u32 %v1489, 7
        %v1491 = vsub.s32 %v1488, %v1490
        %v1492 = vrot.slane %v1484, %v1491
        %v1494 = vunpack.c.l.s4 1934713408
        %v1495 = vunpack.c.0.s8 %v1494
        %v1496 = vlaneseq
        %v1497 = vshrl.u32 %v1496, 7
        %v1498 = vsub.s32 %v1495, %v1497
        %v1499 = vrot.slane %v1485, %v1498
        %v1500 = vcombine.low %v1475, %v1483
        %v1501 = vcombine.high %v1475, %v1483
        %v1503 = vunpack.c.l.s4 1934713408
        %v1504 = vunpack.c.0.s8 %v1503
        %v1505 = vlaneseq
        %v1506 = vshrl.u32 %v1505, 7
        %v1507 = vsub.s32 %v1504, %v1506
        %v1508 = vrot.slane %v1500, %v1507
        %v1510 = vunpack.c.l.s4 1934713408
        %v1511 = vunpack.c.0.s8 %v1510
        %v1512 = vlaneseq
        %v1513 = vshrl.u32 %v1512, 7
        %v1514 = vsub.s32 %v1511, %v1513
        %v1515 = vrot.slane %v1501, %v1514
        %v1516 = vcombine.low %v1492, %v1508
        %v1517 = vcombine.high %v1492, %v1508
        %v1518 = vcombine.low %v1499, %v1515
        %v1519 = vcombine.high %v1499, %v1515
        %1521 = vrot.lane.b32.xlu0 %v1517, 8
        %v1522 = vpop.permute.xlu0 %1521
        %1525 = vrot.lane.b32.xlu0 %v1518, 16
        %v1526 = vpop.permute.xlu0 %1525
        %1529 = vrot.lane.b32.xlu0 %v1519, 24
        %v1530 = vpop.permute.xlu0 %1529
        %v1532 = vsel %vm468, %v1516, %v1522
        %vm1533 = vcmask 130048
        %v1534 = vsel %vm1533, %v1532, %v1526
        %vm1535 = vcmask 195584
        %v1536 = vsel %vm1535, %v1534, %v1530
        %v1537 = vld [vmem:[#allocation7] sm:$0xff]
        %v1538 = vld [vmem:[#allocation7 + $0x8] sm:$0xff]
        %v1539 = vld [vmem:[#allocation7 + $0x10] sm:$0xff]
        %v1540 = vld [vmem:[#allocation7 + $0x18] sm:$0xff]
        %v1541 = vld [vmem:[%s3] sm:$0x1]
        %v1543 = vlaneseq
        %v1544 = vshrl.u32 %v1543, 7
        %v1545 = vsub.s32 0, %v1544
        %v1546 = vrot.slane %v1541, %v1545
        %v1549 = vsel %vm247, %v1536, 0
        %1551 = vmatprep.subr.mxu0 0.0
        %1552 = vmatpush1.msra.mxu0 %v1537
        %1553 = vmatprep.subr.mxu0 0.0
        %1554 = vmatpush1.msra.mxu0 %v1538
        %1555 = vmatprep.subr.mxu0 0.0
        %1556 = vmatpush1.msra.mxu0 %v1539
        %1557 = vmatprep.subr.mxu0 0.0
        %1558 = vmatpush1.msra.mxu0 %v1540
        %1559 = vmatprep.subr.mxu0 0.0
        %1560 = vmatpush1.msra.mxu0 0.0
        %1561 = vmatprep.subr.mxu0 0.0
        %1562 = vmatpush1.msra.mxu0 0.0
        %1563 = vmatprep.subr.mxu0 0.0
        %1564 = vmatpush1.msra.mxu0 0.0
        %1565 = vmatprep.subr.mxu0 0.0
        %1566 = vmatpush1.msra.mxu0 0.0
        %1567 = vmatprep.subr.mxu0 0.0
        %1568 = vmatpush1.msra.mxu0 0.0
        %1569 = vmatprep.subr.mxu0 0.0
        %1570 = vmatpush1.msra.mxu0 0.0
        %1571 = vmatprep.subr.mxu0 0.0
        %1572 = vmatpush1.msra.mxu0 0.0
        %1573 = vmatprep.subr.mxu0 0.0
        %1574 = vmatpush1.msra.mxu0 0.0
        %1575 = vmatprep.subr.mxu0 0.0
        %1576 = vmatpush1.msra.mxu0 0.0
        %1577 = vmatprep.subr.mxu0 0.0
        %1578 = vmatpush1.msra.mxu0 0.0
        %1579 = vmatprep.subr.mxu0 0.0
        %1580 = vmatpush1.msra.mxu0 0.0
        %1581 = vmatprep.subr.mxu0 0.0
        %1582 = vmatpush1.msra.mxu0 0.0
        %1583 = vmatprep.subr.mxu0 0.0
        %1584 = vmatpush1.msra.mxu0 0.0
        %1585 = vmatprep.subr.mxu0 0.0
        %1586 = vmatpush1.msra.mxu0 0.0
        %1587 = vmatprep.subr.mxu0 0.0
        %1588 = vmatpush1.msra.mxu0 0.0
        %1589 = vmatprep.subr.mxu0 0.0
        %1590 = vmatpush1.msra.mxu0 0.0
        %1591 = vmatprep.subr.mxu0 0.0
        %1592 = vmatpush1.msra.mxu0 0.0
        %1593 = vmatprep.subr.mxu0 0.0
        %1594 = vmatpush1.msra.mxu0 0.0
        %1595 = vmatprep.subr.mxu0 0.0
        %1596 = vmatpush1.msra.mxu0 0.0
        %1597 = vmatprep.subr.mxu0 0.0
        %1598 = vmatpush1.msra.mxu0 0.0
        %1599 = vmatprep.subr.mxu0 0.0
        %1600 = vmatpush1.msra.mxu0 0.0
        %1601 = vmatprep.subr.mxu0 0.0
        %1602 = vmatpush1.msra.mxu0 0.0
        %1603 = vmatprep.subr.mxu0 0.0
        %1604 = vmatpush1.msra.mxu0 0.0
        %1605 = vmatprep.subr.mxu0 0.0
        %1606 = vmatpush1.msra.mxu0 0.0
        %1607 = vmatprep.subr.mxu0 0.0
        %1608 = vmatpush1.msra.mxu0 0.0
        %1609 = vmatprep.subr.mxu0 0.0
        %1610 = vmatpush1.msra.mxu0 0.0
        %1611 = vmatprep.subr.mxu0 0.0
        %1612 = vmatpush1.msra.mxu0 0.0
        %1613 = vmatprep.subr.mxu0 0.0
        %1614 = vmatpush1.msra.mxu0 0.0
        %1615 = vmatprep.mubr.f32.mxu0 0.0
        %1616 = vmatmul.mubr.f32.gmra.mrb[0].mxu0 %v1549
        %v1617 = vpop.f32.mrb[0].mxu0
        %v1618 = vadd.f32 %v1546, %v1617
        %v1619 = vpop.f32.mrb[0].mxu0
        %1620 = vdwg.mxu0
        %1621 = vst.msk [vmem:[%s241] sm:$0xff] %vm247, %v1618
        %s1622 = sand.u32 %s119, 1
        %s1623 = scalar_lea.sflag [#allocation4], %s1622
        %s1624 = sand.u32 %s119, 1
        %s1625 = smul.addr %s1624, 8
        %s1626 = scalar_lea.vmem [#allocation8], %s1625
        // Predicated region
        $region49: #{tpu_custom_call.1} parent=35 // pred_check
          %p1627 = pneg %p129
        $region50: #{tpu_custom_call.1} parent=35 // pred_check_branch
          %1629 = sbr.rel (%p1627) target = $region52
        $region51: #{tpu_custom_call.1} parent=35 // pred_region
          %s1631 = ssub.s32 128, 128
          %1632 = vsyncadd %s1623, %s1631
          %s1633 = smul.addr %s22, 128
          %s1634 = scalar_lea.hbm %s4, %s1633
          %s1636 = sshll.u32 %s1626, 4
          %s1637 = int_to_ptr.vmem [resolvable:$true] %s1636
          %1639 = dma.vmem_to_hbm [thread:$0]  %s1637, 128, %s1634, %s1623
        $region52: #{tpu_custom_call.1} parent=35 // pred_fallthru
          _
      $region36: #{tpu_custom_call.1} parent=5 // pred_fallthru
        _
      %p1640 = scmp.le.s32.totalorder 2, %s17
      // Predicated region
      $region53: #{tpu_custom_call.1} parent=5 // pred_check
        %p1641 = pneg %p1640
      $region54: #{tpu_custom_call.1} parent=5 // pred_check_branch
        %1643 = sbr.rel (%p1641) target = $region56
      $region55: #{tpu_custom_call.1} parent=5 // pred_region
        %s1644 = ssub.s32 %s17, 2
        // Predicated region
        $region57: #{tpu_custom_call.1} parent=55 // pred_check
          %p1645 = pneg %p135
        $region58: #{tpu_custom_call.1} parent=55 // pred_check_branch
          %1647 = sbr.rel (%p1645) target = $region60
        $region59: #{tpu_custom_call.1} parent=55 // pred_region
          %s1648 = sand.u32 %s120, 1
          %s1649 = scalar_lea.sflag [#allocation4], %s1648
          %s1650 = sand.u32 %s120, 1
          %s1651 = smul.addr %s1650, 8
          %s1652 = scalar_lea.vmem [#allocation8], %s1651
          %1653 = dma.done %s1649, 128
        $region60: #{tpu_custom_call.1} parent=55 // pred_fallthru
          _
      $region56: #{tpu_custom_call.1} parent=5 // pred_fallthru
        _
    $region6: #{tpu_custom_call.1} parent=1 // loop_footer
      %s21 = sadd.s32 1, %s17
    $region7: #{tpu_custom_call.1} parent=1 // loop_footer_branch
      %16 = sbr.rel target = $region3
    $region8: #{tpu_custom_call.1} parent=1 // loop_exit
      _
    %1654 = vsyncpa [#allocation3], 1
    %s1655 = scalar_lea.sflag [#allocation3], 1
    %1656 = vsyncpa %s1655, 1
    %1657 = vsyncpa [#allocation6], 1
    %1658 = vsyncpa [#allocation4], 1
    %s1659 = scalar_lea.sflag [#allocation4], 1
    %1660 = vsyncpa %s1659, 1

</llo_original>
